<compile_context>
chip_gen: v5e
topology: v5e:2x2
jax: 0.10.0
libtpu: 0.0.40
codegen_flags: <defaults>
</compile_context>

<pallas_src>
import functools

import jax
import jax.numpy as jnp
from jax.experimental import pallas as pl
from jax.experimental.pallas import tpu as pltpu

EPS = 1e-5


# ---------------------------------------------------------------------------
# Fused Pallas kernel: expand(1x1, MXU) -> depthwise 3x3 (VPU, lane-dense)
#                      -> project(1x1, MXU)  [+ stride==1 shortcut 1x1, MXU]
# ---------------------------------------------------------------------------
def _fused_bottleneck_kernel(*refs, stride, th, w_out, wp, cin, cmid, cout,
                             has_shortcut):
    if has_shortcut:
        (x_ref, w1_ref, b1_ref, w2_ref, b2_ref, w3_ref, b3_ref,
         ws_ref, bs_ref, o_ref) = refs
    else:
        (x_ref, w1_ref, b1_ref, w2_ref, b2_ref, w3_ref, b3_ref, o_ref) = refs

    hp = x_ref.shape[1]                       # padded (and maybe parity-permuted) rows
    wcm = w_out * cmid
    r0 = pl.multiple_of(pl.program_id(1) * th, th)

    w1v = w1_ref[...]                         # (wp*cin, wp*cmid)   block-diag expand
    b1v = b1_ref[0, :]                        # (wp*cmid,)          pad columns pre-zeroed
    b2v = b2_ref[0, :]                        # (w_out*cmid,)
    w3v = w3_ref[...]                         # (w_out*cmid, w_out*cout) block-diag project
    b3v = b3_ref[0, :]                        # (w_out*cout,)

    def expand(row_start, n_rows):
        """1x1 expand + folded BN + ReLU6 on n_rows padded rows, lane-dense output.

        One MXU matmul against a block-diagonal weight lands the result directly in the
        (rows, width*cmid) lane-dense layout.  Left/right halo columns are zeroed via the
        zeroed bias lanes; only the two padded rows need an explicit (rows,1) mask.
        """
        xt = x_ref[0, pl.ds(row_start, n_rows), :]              # (n_rows, wp*cin)
        e = jnp.dot(xt, w1v, preferred_element_type=jnp.float32) + b1v
        e = jnp.clip(e, 0.0, 6.0)
        gr = jax.lax.broadcasted_iota(jnp.int32, (n_rows, 1), 0) + row_start
        return jnp.where((gr > 0) & (gr < hp - 1), e, 0.0)

    # ---- depthwise 3x3 (+ folded BN + ReLU6): 9 lane-dense VPU FMAs -------------
    acc = jnp.zeros((th, wcm), jnp.float32)
    if stride == 1:
        e = expand(r0, th + 2)                                  # rows r0 .. r0+th+1
        for dh in range(3):
            e_dh = e[dh:dh + th, :]
            for dw in range(3):
                win = e_dh[:, dw * cmid:dw * cmid + wcm]
                acc = acc + win * w2_ref[dh * 3 + dw, :]
    else:
        # Input was permuted to [even rows | odd rows] x [even cols | odd cols] in the
        # wrapper, so every stride-2 tap is a contiguous (th, w_out*cmid) lane window.
        we = (wp + 1) // 2
        he = (hp + 1) // 2
        e_even = expand(r0, th + 1)                             # even padded rows
        e_odd = expand(he + r0, th)                             # odd padded rows
        for dh in range(3):
            rows = e_odd if dh == 1 else e_even[dh // 2:dh // 2 + th, :]
            for dw in range(3):
                c0 = we if dw == 1 else dw // 2
                win = rows[:, c0 * cmid:c0 * cmid + wcm]
                acc = acc + win * w2_ref[dh * 3 + dw, :]
    d = jnp.clip(acc + b2v, 0.0, 6.0)                           # (th, w_out*cmid)

    # ---- project 1x1 on the MXU; result is already the lane-dense output block ----
    out = jnp.dot(d, w3v, preferred_element_type=jnp.float32) + b3v   # (th, w_out*cout)

    if has_shortcut:
        # Fused Conv1x1BN shortcut: interior rows of x, block-diag weight skips pad cols.
        xs = x_ref[0, pl.ds(r0 + 1, th), :]                     # (th, wp*cin)
        out = out + jnp.dot(xs, ws_ref[...],
                            preferred_element_type=jnp.float32) + bs_ref[0, :]

    o_ref[0] = out                                              # lane-dense store


# ---------------------------------------------------------------------------
# Wrapper helpers
# ---------------------------------------------------------------------------
def _fold_bn(w, b, a, c):
    """(conv(x, w) + b) * a + c  ==  conv(x, w * a) + (b * a + c)."""
    return w * a, b * a + c


def _chip_budgets():
    """Generation-aware VMEM budgeting (v5e/v6e: 128 MiB, v7x: 64 MiB per core)."""
    try:
        cap = int(pltpu.get_tpu_info().vmem_capacity_bytes)
    except Exception:
        cap = 64 << 20                       # conservative default (v7x per-core size)
    if cap >= (100 << 20):                   # v5e / v6e class
        return 24 << 20, 96 << 20, False
    return 10 << 20, 48 << 20, True          # v7x class: tighter budget, 2 TCs


def _pick_tile_rows(h_out, wp, cmid, stride, budget_bytes, prefer_split):
    """Largest row tile that (a) divides h_out, (b) keeps the lane-dense output block
    legal ((th, w*cout) needs th % 8 == 0 unless th == h_out), and (c) fits the
    per-step expanded-activation budget.  A split is only preferred when we need a
    parallel grid extent >= 2 to feed both TensorCores of a v7x chip."""
    legal = [t for t in range(h_out, 0, -1)
             if h_out % t == 0 and (t % 8 == 0 or t == h_out)]

    def fits(t):
        rows_e = (t + 2) if stride == 1 else (2 * t + 1)
        return 4 * rows_e * wp * cmid * 3 <= budget_bytes       # e + acc/d + headroom

    fitting = [t for t in legal if fits(t)] or [legal[-1]]
    if prefer_split:
        for t in fitting:
            if h_out // t >= 2:
                return t
    return fitting[0]


def inverted_residual(x_nchw, p, stride):
    n, cin, h, w = x_nchw.shape
    x = jnp.transpose(x_nchw, (0, 2, 3, 1)).astype(jnp.float32)      # NHWC
    cmid = p["w1"].shape[1]
    cout = p["w3"].shape[1]
    h_out = (h - 1) // stride + 1
    w_out = (w - 1) // stride + 1

    # Fold BN (inference) into conv weights/biases once, on the tiny weight tensors.
    w1f, b1f = _fold_bn(p["w1"], p["b1"], p["a1"], p["c1"])
    w2f, b2f = _fold_bn(p["w2"], p["b2"], p["a2"], p["c2"])
    w3f, b3f = _fold_bn(p["w3"], p["b3"], p["a3"], p["c3"])

    # Spatial zero padding on the small Cin tensor; parity permutation for stride 2 so
    # stride-2 depthwise taps become contiguous windows in the kernel.
    xp = jnp.pad(x, ((0, 0), (1, 1), (1, 1), (0, 0)))
    if stride == 2:
        assert h % 2 == 0 and w % 2 == 0
        xp = jnp.concatenate([xp[:, 0::2], xp[:, 1::2]], axis=1)
        xp = jnp.concatenate([xp[:, :, 0::2], xp[:, :, 1::2]], axis=2)
    hp, wp = xp.shape[1], xp.shape[2]
    x_flat = xp.reshape(n, hp, wp * cin)                        # lane-dense input

    # --- Structured (block-diagonal / lane-tiled) weights, built once on host side ---
    eye_w = jnp.eye(wp, dtype=jnp.float32)
    w1_big = jnp.einsum("cm,ij->icjm", w1f, eye_w).reshape(wp * cin, wp * cmid)
    col = jnp.repeat(jnp.arange(wp), cmid)
    b1_lane = jnp.where((col > 0) & (col < wp - 1),             # zero bias on pad columns
                        jnp.tile(b1f, wp), 0.0).reshape(1, wp * cmid)

    w2_lane = jnp.tile(w2f.reshape(9, 1, cmid), (1, w_out, 1)).reshape(9, w_out * cmid)
    b2_lane = jnp.tile(b2f, w_out).reshape(1, w_out * cmid)

    eye_o = jnp.eye(w_out, dtype=jnp.float32)
    w3_big = jnp.einsum("mo,ij->imjo", w3f, eye_o).reshape(w_out * cmid, w_out * cout)
    b3_lane = jnp.tile(b3f, w_out).reshape(1, w_out * cout)

    tile_budget, vmem_limit, multi_core = _chip_budgets()
    th = _pick_tile_rows(h_out, wp, cmid, stride, tile_budget,
                         prefer_split=(multi_core and n == 1))
    n_row_tiles = h_out // th
    wco = w_out * cout

    def _w(arr):
        return pl.BlockSpec(arr.shape, lambda ni, ti: (0,) * arr.ndim)

    in_specs = [pl.BlockSpec((1, hp, wp * cin), lambda ni, ti: (ni, 0, 0)),
                _w(w1_big), _w(b1_lane), _w(w2_lane), _w(b2_lane),
                _w(w3_big), _w(b3_lane)]
    args = [x_flat, w1_big, b1_lane, w2_lane, b2_lane, w3_big, b3_lane]
    if stride == 1:
        wsf, bsf = _fold_bn(p["ws"], p["bs"], p["as"], p["cs"])
        sel = jnp.zeros((wp, w_out), jnp.float32).at[1:1 + w_out, :].set(
            jnp.eye(w_out, dtype=jnp.float32))                  # maps padded col wo+1 -> wo
        ws_big = jnp.einsum("co,ij->icjo", wsf, sel).reshape(wp * cin, w_out * cout)
        bs_lane = jnp.tile(bsf, w_out).reshape(1, w_out * cout)
        in_specs += [_w(ws_big), _w(bs_lane)]
        args += [ws_big, bs_lane]

    kernel = functools.partial(_fused_bottleneck_kernel, stride=stride, th=th,
                               w_out=w_out, wp=wp, cin=cin, cmid=cmid, cout=cout,
                               has_shortcut=(stride == 1))

    out = pl.pallas_call(
        kernel,
        out_shape=jax.ShapeDtypeStruct((n, h_out, wco), jnp.float32),
        grid=(n, n_row_tiles),
        in_specs=in_specs,
        out_specs=pl.BlockSpec((1, th, wco), lambda ni, ti: (ni, ti, 0)),
        compiler_params=pltpu.CompilerParams(
            dimension_semantics=("parallel", "parallel"),
            vmem_limit_bytes=vmem_limit),
    )(*args)

    out = out.reshape(n, h_out, w_out, cout)
    return jnp.transpose(out, (0, 3, 1, 2))                     # back to NCHW


# ---------------------------------------------------------------------------
# Deterministic parameter construction (synthetic; BN in inference mode)
# ---------------------------------------------------------------------------
def _bn_affine(key, c):
    k1, k2, k3, k4 = jax.random.split(key, 4)
    gamma = 1.0 + 0.1 * jax.random.normal(k1, (c,), jnp.float32)
    beta = 0.1 * jax.random.normal(k2, (c,), jnp.float32)
    mean = 0.1 * jax.random.normal(k3, (c,), jnp.float32)
    var = 1.0 + 0.5 * jax.random.uniform(k4, (c,), jnp.float32)
    a = gamma / jnp.sqrt(var + EPS)
    c_ = beta - mean * a
    return a, c_


def init_params(key, cin, cout, expansion=6):
    cmid = cin * expansion
    ks = jax.random.split(key, 12)
    p = {}
    p["w1"] = 0.1 * jax.random.normal(ks[0], (cin, cmid), jnp.float32)
    p["b1"] = 0.05 * jax.random.normal(ks[1], (cmid,), jnp.float32)
    p["a1"], p["c1"] = _bn_affine(ks[2], cmid)
    p["w2"] = 0.1 * jax.random.normal(ks[3], (3, 3, cmid), jnp.float32)
    p["b2"] = 0.05 * jax.random.normal(ks[4], (cmid,), jnp.float32)
    p["a2"], p["c2"] = _bn_affine(ks[5], cmid)
    p["w3"] = 0.1 * jax.random.normal(ks[6], (cmid, cout), jnp.float32)
    p["b3"] = 0.05 * jax.random.normal(ks[7], (cout,), jnp.float32)
    p["a3"], p["c3"] = _bn_affine(ks[8], cout)
    p["ws"] = 0.1 * jax.random.normal(ks[9], (cin, cout), jnp.float32)
    p["bs"] = 0.05 * jax.random.normal(ks[10], (cout,), jnp.float32)
    p["as"], p["cs"] = _bn_affine(ks[11], cout)
    return p


# ---------------------------------------------------------------------------
# Pure-JAX reference (elementwise only -> exact f32, independent of matmul precision)
# ---------------------------------------------------------------------------
def reference_forward(x_nchw, p, stride):
    x = jnp.transpose(x_nchw, (0, 2, 3, 1)).astype(jnp.float32)
    n, h, w, _ = x.shape

    def pw(t, wgt, b, a, c, relu6):
        y = jnp.sum(t[..., :, None] * wgt, axis=-2) + b
        y = y * a + c
        return jnp.clip(y, 0.0, 6.0) if relu6 else y

    e = pw(x, p["w1"], p["b1"], p["a1"], p["c1"], True)
    ep = jnp.pad(e, ((0, 0), (1, 1), (1, 1), (0, 0)))
    h_out = (h - 1) // stride + 1
    w_out = (w - 1) // stride + 1
    acc = jnp.zeros((n, h_out, w_out, e.shape[-1]), jnp.float32)
    for dh in range(3):
        for dw in range(3):
            acc = acc + ep[:, dh:dh + h:stride, dw:dw + w:stride, :] * p["w2"][dh, dw, :]
    d = jnp.clip((acc + p["b2"]) * p["a2"] + p["c2"], 0.0, 6.0)
    out = pw(d, p["w3"], p["b3"], p["a3"], p["c3"], False)
    if stride == 1:
        out = out + pw(x, p["ws"], p["bs"], p["as"], p["cs"], False)
    return jnp.transpose(out, (0, 3, 1, 2))


if __name__ == "__main__":
    N, CIN, COUT, H, W = 2, 4, 8, 16, 16
    key = jax.random.PRNGKey(0)
    kx, kp = jax.random.split(key)
    x = jax.random.normal(kx, (N, CIN, H, W), jnp.float32)
    params = init_params(kp, CIN, COUT, expansion=6)

    ok = True
    for stride in (1, 2):
        out = jax.block_until_ready(inverted_residual(x, params, stride))
        ref = jax.block_until_ready(reference_forward(x, params, stride))
        if out.shape != ref.shape or not bool(jnp.allclose(out, ref, atol=5e-3, rtol=5e-3)):
            ok = False

    if ok:
        print("KERNEL_OK")
    else:
        raise SystemExit("mismatch vs reference")
</pallas_src>

<mosaic_0001>
module attributes {stable_mosaic.version = 11 : i64} {
  func.func @_fused_bottleneck_kernel(%arg0: i32, %arg1: i32, %arg2: memref<1x18x72xf32, #tpu.memory_space<vmem>>, %arg3: memref<72x432xf32, #tpu.memory_space<vmem>>, %arg4: memref<1x432xf32, #tpu.memory_space<vmem>>, %arg5: memref<9x384xf32, #tpu.memory_space<vmem>>, %arg6: memref<1x384xf32, #tpu.memory_space<vmem>>, %arg7: memref<384x128xf32, #tpu.memory_space<vmem>>, %arg8: memref<1x128xf32, #tpu.memory_space<vmem>>, %arg9: memref<72x128xf32, #tpu.memory_space<vmem>>, %arg10: memref<1x128xf32, #tpu.memory_space<vmem>>, %arg11: memref<1x16x128xf32, #tpu.memory_space<vmem>>) attributes {dimension_semantics = [#tpu.dimension_semantics<parallel>, #tpu.dimension_semantics<parallel>], iteration_bounds = array<i64: 2, 1>, scalar_prefetch = 0 : i64, scratch_operands = 0 : i64, tpu.core_type = #tpu.core_type<tc>, window_params = [{transform_indices = @transform_0, window_bounds = array<i64: 1, 18, 72>}, {pipeline_mode = #tpu.pipeline_mode<synchronous>, transform_indices = @transform_1, window_bounds = array<i64: 72, 432>}, {pipeline_mode = #tpu.pipeline_mode<synchronous>, transform_indices = @transform_2, window_bounds = array<i64: 1, 432>}, {pipeline_mode = #tpu.pipeline_mode<synchronous>, transform_indices = @transform_3, window_bounds = array<i64: 9, 384>}, {pipeline_mode = #tpu.pipeline_mode<synchronous>, transform_indices = @transform_4, window_bounds = array<i64: 1, 384>}, {pipeline_mode = #tpu.pipeline_mode<synchronous>, transform_indices = @transform_5, window_bounds = array<i64: 384, 128>}, {pipeline_mode = #tpu.pipeline_mode<synchronous>, transform_indices = @transform_6, window_bounds = array<i64: 1, 128>}, {pipeline_mode = #tpu.pipeline_mode<synchronous>, transform_indices = @transform_7, window_bounds = array<i64: 72, 128>}, {pipeline_mode = #tpu.pipeline_mode<synchronous>, transform_indices = @transform_8, window_bounds = array<i64: 1, 128>}, {transform_indices = @transform_9, window_bounds = array<i64: 1, 16, 128>}]} {
    %c16_i32 = arith.constant 16 : i32
    %0 = arith.muli %arg1, %c16_i32 : i32
    %1 = tpu.assume_multiple %0, 16 : i32
    %c0 = arith.constant 0 : index
    %c0_0 = arith.constant 0 : index
    %2 = vector.load %arg3[%c0, %c0_0] : memref<72x432xf32, #tpu.memory_space<vmem>>, vector<72x432xf32>
    %c0_1 = arith.constant 0 : index
    %c0_2 = arith.constant 0 : index
    %3 = vector.load %arg4[%c0_1, %c0_2] : memref<1x432xf32, #tpu.memory_space<vmem>>, vector<1x432xf32>
    %4 = vector.shape_cast %3 : vector<1x432xf32> to vector<432xf32>
    %c0_3 = arith.constant 0 : index
    %c0_4 = arith.constant 0 : index
    %5 = vector.load %arg6[%c0_3, %c0_4] : memref<1x384xf32, #tpu.memory_space<vmem>>, vector<1x384xf32>
    %6 = vector.shape_cast %5 : vector<1x384xf32> to vector<384xf32>
    %c0_5 = arith.constant 0 : index
    %c0_6 = arith.constant 0 : index
    %7 = vector.load %arg7[%c0_5, %c0_6] : memref<384x128xf32, #tpu.memory_space<vmem>>, vector<384x128xf32>
    %c0_7 = arith.constant 0 : index
    %c0_8 = arith.constant 0 : index
    %8 = vector.load %arg8[%c0_7, %c0_8] : memref<1x128xf32, #tpu.memory_space<vmem>>, vector<1x128xf32>
    %9 = vector.shape_cast %8 : vector<1x128xf32> to vector<128xf32>
    %cst = arith.constant 0.000000e+00 : f32
    %10 = vector.broadcast %cst : f32 to vector<16x384xf32>
    %c0_9 = arith.constant 0 : index
    %11 = arith.index_cast %1 : i32 to index
    %c0_10 = arith.constant 0 : index
    %12 = vector.load %arg2[%c0_9, %11, %c0_10] : memref<1x18x72xf32, #tpu.memory_space<vmem>>, vector<1x18x72xf32>
    %13 = vector.shape_cast %12 : vector<1x18x72xf32> to vector<18x72xf32>
    %cst_11 = arith.constant dense<0.000000e+00> : vector<18x432xf32>
    %14 = tpu.matmul %13, %2, %cst_11 {dimension_numbers = #tpu.dot_dimension_numbers<[1], [0], [0], [1], [0, 0, 1, 1], [], []>} : vector<18x72xf32>, vector<72x432xf32>, vector<18x432xf32> -> vector<18x432xf32>
    %15 = vector.shape_cast %4 : vector<432xf32> to vector<1x432xf32>
    %16 = vector.broadcast %15 : vector<1x432xf32> to vector<18x432xf32>
    %17 = arith.addf %14, %16 : vector<18x432xf32>
    %cst_12 = arith.constant 0.000000e+00 : f32
    %cst_13 = arith.constant 6.000000e+00 : f32
    %18 = vector.broadcast %cst_12 : f32 to vector<18x432xf32>
    %19 = arith.maximumf %18, %17 : vector<18x432xf32>
    %20 = vector.broadcast %cst_13 : f32 to vector<18x432xf32>
    %21 = arith.minimumf %20, %19 : vector<18x432xf32>
    %22 = tpu.iota {dimensions = array<i32: 0>} : vector<18x1xi32>
    %23 = vector.broadcast %1 : i32 to vector<18x1xi32>
    %24 = arith.addi %22, %23 : vector<18x1xi32>
    %c0_i32 = arith.constant 0 : i32
    %25 = vector.broadcast %c0_i32 : i32 to vector<18x1xi32>
    %26 = arith.cmpi sgt, %24, %25 : vector<18x1xi32>
    %c17_i32 = arith.constant 17 : i32
    %27 = vector.broadcast %c17_i32 : i32 to vector<18x1xi32>
    %28 = arith.cmpi slt, %24, %27 : vector<18x1xi32>
    %29 = arith.andi %26, %28 : vector<18x1xi1>
    %cst_14 = arith.constant 0.000000e+00 : f32
    %30 = vector.shape_cast %29 : vector<18x1xi1> to vector<18x1xi1>
    %31 = vector.broadcast %30 : vector<18x1xi1> to vector<18x432xi1>
    %32 = vector.broadcast %cst_14 : f32 to vector<18x432xf32>
    %33 = arith.select %31, %21, %32 : vector<18x432xi1>, vector<18x432xf32>
    %34 = vector.extract_strided_slice %33 {offsets = [0, 0], sizes = [16, 432], strides = [1, 1]} : vector<18x432xf32> to vector<16x432xf32>
    %35 = vector.extract_strided_slice %34 {offsets = [0, 0], sizes = [16, 384], strides = [1, 1]} : vector<16x432xf32> to vector<16x384xf32>
    %c0_15 = arith.constant 0 : index
    %c0_16 = arith.constant 0 : index
    %36 = vector.load %arg5[%c0_15, %c0_16] : memref<9x384xf32, #tpu.memory_space<vmem>>, vector<1x384xf32>
    %37 = vector.shape_cast %36 : vector<1x384xf32> to vector<384xf32>
    %38 = vector.shape_cast %37 : vector<384xf32> to vector<1x384xf32>
    %39 = vector.broadcast %38 : vector<1x384xf32> to vector<16x384xf32>
    %40 = arith.mulf %35, %39 : vector<16x384xf32>
    %41 = arith.addf %10, %40 : vector<16x384xf32>
    %42 = vector.extract_strided_slice %34 {offsets = [0, 24], sizes = [16, 384], strides = [1, 1]} : vector<16x432xf32> to vector<16x384xf32>
    %c1 = arith.constant 1 : index
    %c0_17 = arith.constant 0 : index
    %43 = vector.load %arg5[%c1, %c0_17] : memref<9x384xf32, #tpu.memory_space<vmem>>, vector<1x384xf32>
    %44 = vector.shape_cast %43 : vector<1x384xf32> to vector<384xf32>
    %45 = vector.shape_cast %44 : vector<384xf32> to vector<1x384xf32>
    %46 = vector.broadcast %45 : vector<1x384xf32> to vector<16x384xf32>
    %47 = arith.mulf %42, %46 : vector<16x384xf32>
    %48 = arith.addf %41, %47 : vector<16x384xf32>
    %49 = vector.extract_strided_slice %34 {offsets = [0, 48], sizes = [16, 384], strides = [1, 1]} : vector<16x432xf32> to vector<16x384xf32>
    %c2 = arith.constant 2 : index
    %c0_18 = arith.constant 0 : index
    %50 = vector.load %arg5[%c2, %c0_18] : memref<9x384xf32, #tpu.memory_space<vmem>>, vector<1x384xf32>
    %51 = vector.shape_cast %50 : vector<1x384xf32> to vector<384xf32>
    %52 = vector.shape_cast %51 : vector<384xf32> to vector<1x384xf32>
    %53 = vector.broadcast %52 : vector<1x384xf32> to vector<16x384xf32>
    %54 = arith.mulf %49, %53 : vector<16x384xf32>
    %55 = arith.addf %48, %54 : vector<16x384xf32>
    %56 = vector.extract_strided_slice %33 {offsets = [1, 0], sizes = [16, 432], strides = [1, 1]} : vector<18x432xf32> to vector<16x432xf32>
    %57 = vector.extract_strided_slice %56 {offsets = [0, 0], sizes = [16, 384], strides = [1, 1]} : vector<16x432xf32> to vector<16x384xf32>
    %c3 = arith.constant 3 : index
    %c0_19 = arith.constant 0 : index
    %58 = vector.load %arg5[%c3, %c0_19] : memref<9x384xf32, #tpu.memory_space<vmem>>, vector<1x384xf32>
    %59 = vector.shape_cast %58 : vector<1x384xf32> to vector<384xf32>
    %60 = vector.shape_cast %59 : vector<384xf32> to vector<1x384xf32>
    %61 = vector.broadcast %60 : vector<1x384xf32> to vector<16x384xf32>
    %62 = arith.mulf %57, %61 : vector<16x384xf32>
    %63 = arith.addf %55, %62 : vector<16x384xf32>
    %64 = vector.extract_strided_slice %56 {offsets = [0, 24], sizes = [16, 384], strides = [1, 1]} : vector<16x432xf32> to vector<16x384xf32>
    %c4 = arith.constant 4 : index
    %c0_20 = arith.constant 0 : index
    %65 = vector.load %arg5[%c4, %c0_20] : memref<9x384xf32, #tpu.memory_space<vmem>>, vector<1x384xf32>
    %66 = vector.shape_cast %65 : vector<1x384xf32> to vector<384xf32>
    %67 = vector.shape_cast %66 : vector<384xf32> to vector<1x384xf32>
    %68 = vector.broadcast %67 : vector<1x384xf32> to vector<16x384xf32>
    %69 = arith.mulf %64, %68 : vector<16x384xf32>
    %70 = arith.addf %63, %69 : vector<16x384xf32>
    %71 = vector.extract_strided_slice %56 {offsets = [0, 48], sizes = [16, 384], strides = [1, 1]} : vector<16x432xf32> to vector<16x384xf32>
    %c5 = arith.constant 5 : index
    %c0_21 = arith.constant 0 : index
    %72 = vector.load %arg5[%c5, %c0_21] : memref<9x384xf32, #tpu.memory_space<vmem>>, vector<1x384xf32>
    %73 = vector.shape_cast %72 : vector<1x384xf32> to vector<384xf32>
    %74 = vector.shape_cast %73 : vector<384xf32> to vector<1x384xf32>
    %75 = vector.broadcast %74 : vector<1x384xf32> to vector<16x384xf32>
    %76 = arith.mulf %71, %75 : vector<16x384xf32>
    %77 = arith.addf %70, %76 : vector<16x384xf32>
    %78 = vector.extract_strided_slice %33 {offsets = [2, 0], sizes = [16, 432], strides = [1, 1]} : vector<18x432xf32> to vector<16x432xf32>
    %79 = vector.extract_strided_slice %78 {offsets = [0, 0], sizes = [16, 384], strides = [1, 1]} : vector<16x432xf32> to vector<16x384xf32>
    %c6 = arith.constant 6 : index
    %c0_22 = arith.constant 0 : index
    %80 = vector.load %arg5[%c6, %c0_22] : memref<9x384xf32, #tpu.memory_space<vmem>>, vector<1x384xf32>
    %81 = vector.shape_cast %80 : vector<1x384xf32> to vector<384xf32>
    %82 = vector.shape_cast %81 : vector<384xf32> to vector<1x384xf32>
    %83 = vector.broadcast %82 : vector<1x384xf32> to vector<16x384xf32>
    %84 = arith.mulf %79, %83 : vector<16x384xf32>
    %85 = arith.addf %77, %84 : vector<16x384xf32>
    %86 = vector.extract_strided_slice %78 {offsets = [0, 24], sizes = [16, 384], strides = [1, 1]} : vector<16x432xf32> to vector<16x384xf32>
    %c7 = arith.constant 7 : index
    %c0_23 = arith.constant 0 : index
    %87 = vector.load %arg5[%c7, %c0_23] : memref<9x384xf32, #tpu.memory_space<vmem>>, vector<1x384xf32>
    %88 = vector.shape_cast %87 : vector<1x384xf32> to vector<384xf32>
    %89 = vector.shape_cast %88 : vector<384xf32> to vector<1x384xf32>
    %90 = vector.broadcast %89 : vector<1x384xf32> to vector<16x384xf32>
    %91 = arith.mulf %86, %90 : vector<16x384xf32>
    %92 = arith.addf %85, %91 : vector<16x384xf32>
    %93 = vector.extract_strided_slice %78 {offsets = [0, 48], sizes = [16, 384], strides = [1, 1]} : vector<16x432xf32> to vector<16x384xf32>
    %c8 = arith.constant 8 : index
    %c0_24 = arith.constant 0 : index
    %94 = vector.load %arg5[%c8, %c0_24] : memref<9x384xf32, #tpu.memory_space<vmem>>, vector<1x384xf32>
    %95 = vector.shape_cast %94 : vector<1x384xf32> to vector<384xf32>
    %96 = vector.shape_cast %95 : vector<384xf32> to vector<1x384xf32>
    %97 = vector.broadcast %96 : vector<1x384xf32> to vector<16x384xf32>
    %98 = arith.mulf %93, %97 : vector<16x384xf32>
    %99 = arith.addf %92, %98 : vector<16x384xf32>
    %100 = vector.shape_cast %6 : vector<384xf32> to vector<1x384xf32>
    %101 = vector.broadcast %100 : vector<1x384xf32> to vector<16x384xf32>
    %102 = arith.addf %99, %101 : vector<16x384xf32>
    %cst_25 = arith.constant 0.000000e+00 : f32
    %cst_26 = arith.constant 6.000000e+00 : f32
    %103 = vector.broadcast %cst_25 : f32 to vector<16x384xf32>
    %104 = arith.maximumf %103, %102 : vector<16x384xf32>
    %105 = vector.broadcast %cst_26 : f32 to vector<16x384xf32>
    %106 = arith.minimumf %105, %104 : vector<16x384xf32>
    %cst_27 = arith.constant dense<0.000000e+00> : vector<16x128xf32>
    %107 = tpu.matmul %106, %7, %cst_27 {dimension_numbers = #tpu.dot_dimension_numbers<[1], [0], [0], [1], [0, 0, 1, 1], [], []>} : vector<16x384xf32>, vector<384x128xf32>, vector<16x128xf32> -> vector<16x128xf32>
    %108 = vector.shape_cast %9 : vector<128xf32> to vector<1x128xf32>
    %109 = vector.broadcast %108 : vector<1x128xf32> to vector<16x128xf32>
    %110 = arith.addf %107, %109 : vector<16x128xf32>
    %c1_i32 = arith.constant 1 : i32
    %111 = arith.addi %1, %c1_i32 : i32
    %c0_28 = arith.constant 0 : index
    %112 = arith.index_cast %111 : i32 to index
    %c0_29 = arith.constant 0 : index
    %113 = vector.load %arg2[%c0_28, %112, %c0_29] : memref<1x18x72xf32, #tpu.memory_space<vmem>>, vector<1x16x72xf32>
    %114 = vector.shape_cast %113 : vector<1x16x72xf32> to vector<16x72xf32>
    %c0_30 = arith.constant 0 : index
    %c0_31 = arith.constant 0 : index
    %115 = vector.load %arg9[%c0_30, %c0_31] : memref<72x128xf32, #tpu.memory_space<vmem>>, vector<72x128xf32>
    %cst_32 = arith.constant dense<0.000000e+00> : vector<16x128xf32>
    %116 = tpu.matmul %114, %115, %cst_32 {dimension_numbers = #tpu.dot_dimension_numbers<[1], [0], [0], [1], [0, 0, 1, 1], [], []>} : vector<16x72xf32>, vector<72x128xf32>, vector<16x128xf32> -> vector<16x128xf32>
    %117 = arith.addf %110, %116 : vector<16x128xf32>
    %c0_33 = arith.constant 0 : index
    %c0_34 = arith.constant 0 : index
    %118 = vector.load %arg10[%c0_33, %c0_34] : memref<1x128xf32, #tpu.memory_space<vmem>>, vector<1x128xf32>
    %119 = vector.shape_cast %118 : vector<1x128xf32> to vector<128xf32>
    %120 = vector.shape_cast %119 : vector<128xf32> to vector<1x128xf32>
    %121 = vector.broadcast %120 : vector<1x128xf32> to vector<16x128xf32>
    %122 = arith.addf %117, %121 : vector<16x128xf32>
    %c0_35 = arith.constant 0 : index
    %c0_36 = arith.constant 0 : index
    %c0_37 = arith.constant 0 : index
    %123 = vector.load %arg11[%c0_35, %c0_36, %c0_37] : memref<1x16x128xf32, #tpu.memory_space<vmem>>, vector<1x16x128xf32>
    %124 = vector.shape_cast %123 : vector<1x16x128xf32> to vector<16x128xf32>
    %125 = vector.shape_cast %122 : vector<16x128xf32> to vector<1x16x128xf32>
    tpu.vector_store %arg11[%c0_35, %c0_36, %c0_37], %125 {strides = array<i32>} : memref<1x16x128xf32, #tpu.memory_space<vmem>>, vector<1x16x128xf32>,
    return
  }
  func.func @transform_0(%arg0: i32, %arg1: i32) -> (i32, i32, i32) {
    %c0_i32 = arith.constant 0 : i32
    %c0_i32_0 = arith.constant 0 : i32
    %c0_i32_1 = arith.constant 0 : i32
    return %arg0, %c0_i32, %c0_i32_0 : i32, i32, i32
  }
  func.func @transform_1(%arg0: i32, %arg1: i32) -> (i32, i32) {
    %c0_i32 = arith.constant 0 : i32
    %c0_i32_0 = arith.constant 0 : i32
    %c0_i32_1 = arith.constant 0 : i32
    return %c0_i32, %c0_i32_0 : i32, i32
  }
  func.func @transform_2(%arg0: i32, %arg1: i32) -> (i32, i32) {
    %c0_i32 = arith.constant 0 : i32
    %c0_i32_0 = arith.constant 0 : i32
    %c0_i32_1 = arith.constant 0 : i32
    return %c0_i32, %c0_i32_0 : i32, i32
  }
  func.func @transform_3(%arg0: i32, %arg1: i32) -> (i32, i32) {
    %c0_i32 = arith.constant 0 : i32
    %c0_i32_0 = arith.constant 0 : i32
    %c0_i32_1 = arith.constant 0 : i32
    return %c0_i32, %c0_i32_0 : i32, i32
  }
  func.func @transform_4(%arg0: i32, %arg1: i32) -> (i32, i32) {
    %c0_i32 = arith.constant 0 : i32
    %c0_i32_0 = arith.constant 0 : i32
    %c0_i32_1 = arith.constant 0 : i32
    return %c0_i32, %c0_i32_0 : i32, i32
  }
  func.func @transform_5(%arg0: i32, %arg1: i32) -> (i32, i32) {
    %c0_i32 = arith.constant 0 : i32
    %c0_i32_0 = arith.constant 0 : i32
    %c0_i32_1 = arith.constant 0 : i32
    return %c0_i32, %c0_i32_0 : i32, i32
  }
  func.func @transform_6(%arg0: i32, %arg1: i32) -> (i32, i32) {
    %c0_i32 = arith.constant 0 : i32
    %c0_i32_0 = arith.constant 0 : i32
    %c0_i32_1 = arith.constant 0 : i32
    return %c0_i32, %c0_i32_0 : i32, i32
  }
  func.func @transform_7(%arg0: i32, %arg1: i32) -> (i32, i32) {
    %c0_i32 = arith.constant 0 : i32
    %c0_i32_0 = arith.constant 0 : i32
    %c0_i32_1 = arith.constant 0 : i32
    return %c0_i32, %c0_i32_0 : i32, i32
  }
  func.func @transform_8(%arg0: i32, %arg1: i32) -> (i32, i32) {
    %c0_i32 = arith.constant 0 : i32
    %c0_i32_0 = arith.constant 0 : i32
    %c0_i32_1 = arith.constant 0 : i32
    return %c0_i32, %c0_i32_0 : i32, i32
  }
  func.func @transform_9(%arg0: i32, %arg1: i32) -> (i32, i32, i32) {
    %c0_i32 = arith.constant 0 : i32
    %c0_i32_0 = arith.constant 0 : i32
    return %arg0, %arg1, %c0_i32 : i32, i32, i32
  }
}

</mosaic_0001>

<llo_original>
// kernel: tpu_custom_call.1
$region0: #{tpu_custom_call.1}
  #allocation0 [shape = 'u32[]', space=smem, size = 0x4, offset = 0x4, fixed_abs, tag = 'smem constant byte address 0x4 - core index']
  #allocation1 [shape = 'u32[72,128]{1,0:T(1,128)}', space=vmem, size = 0x9000, scoped, tag = 'internal scratch']
  %s0 = inlined_call_operand.vmem [shape: f32[2,18,72], index: 0, kind: input, shape index: {}]
  %s1 = inlined_call_operand.hbm [shape: f32[72,432], index: 1, kind: input, shape index: {}]
  %s2 = inlined_call_operand.vmem [shape: f32[1,432], index: 2, kind: input, shape index: {}]
  %s3 = inlined_call_operand.hbm [shape: f32[9,384], index: 3, kind: input, shape index: {}]
  %s4 = inlined_call_operand.vmem [shape: f32[1,384], index: 4, kind: input, shape index: {}]
  %s5 = inlined_call_operand.hbm [shape: f32[384,128], index: 5, kind: input, shape index: {}]
  %s6 = inlined_call_operand.vmem [shape: f32[1,128], index: 6, kind: input, shape index: {}]
  %s7 = inlined_call_operand.vmem [shape: f32[72,128], index: 7, kind: input, shape index: {}]
  %s8 = inlined_call_operand.vmem [shape: f32[1,128], index: 8, kind: input, shape index: {}]
  %s9 = inlined_call_operand.hbm [shape: f32[2,16,128], index: 9, kind: output, shape index: {}]
  %s10 = sld [smem:[#allocation0]]
  $region81: #{tpu_custom_call.1} parent=0
    _
  %s12 = ssub.s32 1, %s10
  %s13 = scalar_select 0, %s12, %s10
  $region1: #{tpu_custom_call.1} parent=0
    #allocation2 [shape = 'u8[147456]{0}', space=vmem, size = 0x24000, scoped, tag = 'input window, operand 1, single buffered']
    #allocation3 [shape = 's32[2]{0}', space=sflag, size = 0x8, scoped, tag = 'scoped memory for tpu_custom_call.1']
    #allocation4 [shape = 's32[2]{0}', space=sflag, size = 0x8, scoped, tag = 'scoped memory for tpu_custom_call.1']
    #allocation5 [shape = 'u8[24576]{0}', space=vmem, size = 0x6000, scoped, tag = 'input window, operand 3, single buffered']
    #allocation6 [shape = 's32[1]{0}', space=sflag, size = 0x4, scoped, tag = 'scoped memory for tpu_custom_call.1']
    #allocation7 [shape = 'u8[196608]{0}', space=vmem, size = 0x30000, scoped, tag = 'input window, operand 5, single buffered']
    #allocation8 [shape = 'u8[16384]{0}', space=vmem, size = 0x4000, scoped, tag = 'output window, operand 0']
    %14 = vsyncpa [#allocation3], 0
    %15 = vsyncpa [#allocation6], 0
    %16 = vsyncpa [#allocation4], 0
    %s17 = scalar_lea.sflag [#allocation4], 1
    %18 = vsyncpa %s17, 0
    loop: start=0, step=1, limit=4
    $region2: #{tpu_custom_call.1} parent=1 // loop_pre_header
      _
    $region3: #{tpu_custom_call.1} parent=1 // loop_header
      %s20 = sphi 0, %s24
      %p21 = scmp.ge.s32.totalorder %s20, 4
      %s27 = sphi 0, %s39
      %s28 = sphi 0, %s35
      %s29 = sphi 0, %s27
      %s30 = sphi 0, %s28
      %s31 = sphi 0, %s29
      %s32 = sphi 0, %s30
      %s42 = sphi 0, %s44
      %s45 = sphi 0, %s42
      %s46 = sphi 0, %s45
      %s62 = sphi 0, %s46
      %s66 = sphi 0, %s66
      %s68 = sphi 0, %s66
      %s69 = sphi 0, %s68
      %s83 = sphi 0, %s69
      %s87 = sphi 0, %s87
      %s89 = sphi 0, %s87
      %s90 = sphi 0, %s89
      %s104 = sphi 0, %s90
      %s108 = sphi 0, %s108
      %s110 = sphi 0, %s108
      %s111 = sphi 0, %s110
      %s125 = sphi 0, %s111
      %s129 = sphi 0, %s129
      %s131 = sphi 0, %s129
      %s132 = sphi 0, %s131
      %s146 = sphi 0, %s132
      %s150 = sphi 0, %s150
      %s152 = sphi 0, %s150
      %s153 = sphi 0, %s152
      %s167 = sphi 0, %s153
      %s171 = sphi 0, %s171
      %s173 = sphi 0, %s171
      %s174 = sphi 0, %s173
      %s188 = sphi 0, %s174
      %s192 = sphi 0, %s192
      %s194 = sphi 0, %s192
      %s195 = sphi 0, %s194
      %s209 = sphi 0, %s195
      %s213 = sphi 0, %s213
      %s215 = sphi 0, %s213
      %s216 = sphi 0, %s215
      %s230 = sphi 0, %s216
      %s238 = sphi 0, %s240
      %s241 = sphi 0, %s238
      %s242 = sphi 0, %s241
      %s258 = sphi 0, %s242
    $region4: #{tpu_custom_call.1} parent=1 // loop_header_branch
      %23 = sbr.rel (%p21) target = $region8
    $region5: #{tpu_custom_call.1} parent=1 // loop_body
      %s25 = ssub.s32 %s20, 1
      %s26 = ssub.s32 %s20, 2
      %s33 = sadd.s32 1, %s28
      %p34 = scmp.ge.s32.totalorder %s33, 1
      %s35 = scalar_select %p34, 0, %s33
      %s36 = sadd.s32 1, %s27
      %s37 = scalar_select %p34, %s36, %s27
      %p38 = scmp.ge.s32.totalorder %s37, 2
      %s39 = scalar_select %p38, 0, %s37
      %s40 = ssub.s32 %s27, %s39
      %p41 = scmp.eq.s32.totalorder %s40, 0
      %s43 = sadd.s32 %s42, 1
      %s44 = scalar_select %p41, %s42, %s43
      %p47 = pneg %p41
      %p48 = scmp.eq.s32.totalorder %s20, 1
      %p49 = por %p47, %p48
      %p50 = scmp.ne.s32.totalorder %s42, %s45
      %p51 = scmp.eq.s32.totalorder %s20, 0
      %p52 = por %p50, %p51
      %p53 = scmp.ne.s32.totalorder %s42, %s45
      %p54 = scmp.eq.s32.totalorder %s25, 1
      %p55 = por %p53, %p54
      %p56 = scmp.ne.s32.totalorder %s45, %s46
      %p57 = scmp.eq.s32.totalorder %s25, 0
      %p58 = por %p56, %p57
      %p59 = scmp.ne.s32.totalorder %s45, %s46
      %p60 = scmp.eq.s32.totalorder %s26, 1
      %p61 = por %p59, %p60
      %p63 = scmp.ne.s32.totalorder %s46, %s62
      %p64 = scmp.eq.s32.totalorder %s26, 0
      %p65 = por %p63, %p64
      %s67 = sadd.s32 %s66, 1
      %p70 = scmp.eq.s32.totalorder %s20, 1
      %p71 = scmp.ne.s32.totalorder %s66, %s68
      %p72 = scmp.eq.s32.totalorder %s20, 0
      %p73 = por %p71, %p72
      %p74 = scmp.ne.s32.totalorder %s66, %s68
      %p75 = scmp.eq.s32.totalorder %s25, 1
      %p76 = por %p74, %p75
      %p77 = scmp.ne.s32.totalorder %s68, %s69
      %p78 = scmp.eq.s32.totalorder %s25, 0
      %p79 = por %p77, %p78
      %p80 = scmp.ne.s32.totalorder %s68, %s69
      %p81 = scmp.eq.s32.totalorder %s26, 1
      %p82 = por %p80, %p81
      %p84 = scmp.ne.s32.totalorder %s69, %s83
      %p85 = scmp.eq.s32.totalorder %s26, 0
      %p86 = por %p84, %p85
      %s88 = sadd.s32 %s87, 1
      %p91 = scmp.eq.s32.totalorder %s20, 1
      %p92 = scmp.ne.s32.totalorder %s87, %s89
      %p93 = scmp.eq.s32.totalorder %s20, 0
      %p94 = por %p92, %p93
      %p95 = scmp.ne.s32.totalorder %s87, %s89
      %p96 = scmp.eq.s32.totalorder %s25, 1
      %p97 = por %p95, %p96
      %p98 = scmp.ne.s32.totalorder %s89, %s90
      %p99 = scmp.eq.s32.totalorder %s25, 0
      %p100 = por %p98, %p99
      %p101 = scmp.ne.s32.totalorder %s89, %s90
      %p102 = scmp.eq.s32.totalorder %s26, 1
      %p103 = por %p101, %p102
      %p105 = scmp.ne.s32.totalorder %s90, %s104
      %p106 = scmp.eq.s32.totalorder %s26, 0
      %p107 = por %p105, %p106
      %s109 = sadd.s32 %s108, 1
      %p112 = scmp.eq.s32.totalorder %s20, 1
      %p113 = scmp.ne.s32.totalorder %s108, %s110
      %p114 = scmp.eq.s32.totalorder %s20, 0
      %p115 = por %p113, %p114
      %p116 = scmp.ne.s32.totalorder %s108, %s110
      %p117 = scmp.eq.s32.totalorder %s25, 1
      %p118 = por %p116, %p117
      %p119 = scmp.ne.s32.totalorder %s110, %s111
      %p120 = scmp.eq.s32.totalorder %s25, 0
      %p121 = por %p119, %p120
      %p122 = scmp.ne.s32.totalorder %s110, %s111
      %p123 = scmp.eq.s32.totalorder %s26, 1
      %p124 = por %p122, %p123
      %p126 = scmp.ne.s32.totalorder %s111, %s125
      %p127 = scmp.eq.s32.totalorder %s26, 0
      %p128 = por %p126, %p127
      %s130 = sadd.s32 %s129, 1
      %p133 = scmp.eq.s32.totalorder %s20, 1
      %p134 = scmp.ne.s32.totalorder %s129, %s131
      %p135 = scmp.eq.s32.totalorder %s20, 0
      %p136 = por %p134, %p135
      %p137 = scmp.ne.s32.totalorder %s129, %s131
      %p138 = scmp.eq.s32.totalorder %s25, 1
      %p139 = por %p137, %p138
      %p140 = scmp.ne.s32.totalorder %s131, %s132
      %p141 = scmp.eq.s32.totalorder %s25, 0
      %p142 = por %p140, %p141
      %p143 = scmp.ne.s32.totalorder %s131, %s132
      %p144 = scmp.eq.s32.totalorder %s26, 1
      %p145 = por %p143, %p144
      %p147 = scmp.ne.s32.totalorder %s132, %s146
      %p148 = scmp.eq.s32.totalorder %s26, 0
      %p149 = por %p147, %p148
      %s151 = sadd.s32 %s150, 1
      %p154 = scmp.eq.s32.totalorder %s20, 1
      %p155 = scmp.ne.s32.totalorder %s150, %s152
      %p156 = scmp.eq.s32.totalorder %s20, 0
      %p157 = por %p155, %p156
      %p158 = scmp.ne.s32.totalorder %s150, %s152
      %p159 = scmp.eq.s32.totalorder %s25, 1
      %p160 = por %p158, %p159
      %p161 = scmp.ne.s32.totalorder %s152, %s153
      %p162 = scmp.eq.s32.totalorder %s25, 0
      %p163 = por %p161, %p162
      %p164 = scmp.ne.s32.totalorder %s152, %s153
      %p165 = scmp.eq.s32.totalorder %s26, 1
      %p166 = por %p164, %p165
      %p168 = scmp.ne.s32.totalorder %s153, %s167
      %p169 = scmp.eq.s32.totalorder %s26, 0
      %p170 = por %p168, %p169
      %s172 = sadd.s32 %s171, 1
      %p175 = scmp.eq.s32.totalorder %s20, 1
      %p176 = scmp.ne.s32.totalorder %s171, %s173
      %p177 = scmp.eq.s32.totalorder %s20, 0
      %p178 = por %p176, %p177
      %p179 = scmp.ne.s32.totalorder %s171, %s173
      %p180 = scmp.eq.s32.totalorder %s25, 1
      %p181 = por %p179, %p180
      %p182 = scmp.ne.s32.totalorder %s173, %s174
      %p183 = scmp.eq.s32.totalorder %s25, 0
      %p184 = por %p182, %p183
      %p185 = scmp.ne.s32.totalorder %s173, %s174
      %p186 = scmp.eq.s32.totalorder %s26, 1
      %p187 = por %p185, %p186
      %p189 = scmp.ne.s32.totalorder %s174, %s188
      %p190 = scmp.eq.s32.totalorder %s26, 0
      %p191 = por %p189, %p190
      %s193 = sadd.s32 %s192, 1
      %p196 = scmp.eq.s32.totalorder %s20, 1
      %p197 = scmp.ne.s32.totalorder %s192, %s194
      %p198 = scmp.eq.s32.totalorder %s20, 0
      %p199 = por %p197, %p198
      %p200 = scmp.ne.s32.totalorder %s192, %s194
      %p201 = scmp.eq.s32.totalorder %s25, 1
      %p202 = por %p200, %p201
      %p203 = scmp.ne.s32.totalorder %s194, %s195
      %p204 = scmp.eq.s32.totalorder %s25, 0
      %p205 = por %p203, %p204
      %p206 = scmp.ne.s32.totalorder %s194, %s195
      %p207 = scmp.eq.s32.totalorder %s26, 1
      %p208 = por %p206, %p207
      %p210 = scmp.ne.s32.totalorder %s195, %s209
      %p211 = scmp.eq.s32.totalorder %s26, 0
      %p212 = por %p210, %p211
      %s214 = sadd.s32 %s213, 1
      %p217 = scmp.eq.s32.totalorder %s20, 1
      %p218 = scmp.ne.s32.totalorder %s213, %s215
      %p219 = scmp.eq.s32.totalorder %s20, 0
      %p220 = por %p218, %p219
      %p221 = scmp.ne.s32.totalorder %s213, %s215
      %p222 = scmp.eq.s32.totalorder %s25, 1
      %p223 = por %p221, %p222
      %p224 = scmp.ne.s32.totalorder %s215, %s216
      %p225 = scmp.eq.s32.totalorder %s25, 0
      %p226 = por %p224, %p225
      %p227 = scmp.ne.s32.totalorder %s215, %s216
      %p228 = scmp.eq.s32.totalorder %s26, 1
      %p229 = por %p227, %p228
      %p231 = scmp.ne.s32.totalorder %s216, %s230
      %p232 = scmp.eq.s32.totalorder %s26, 0
      %p233 = por %p231, %p232
      %s234 = ssub.s32 %s27, %s39
      %s235 = ssub.s32 %s28, %s35
      %s236 = sor.u32 %s234, %s235
      %p237 = scmp.eq.s32.totalorder %s236, 0
      %s239 = sadd.s32 %s238, 1
      %s240 = scalar_select %p237, %s238, %s239
      %p243 = pneg %p237
      %p244 = scmp.eq.s32.totalorder %s20, 1
      %p245 = por %p243, %p244
      %p246 = scmp.ne.s32.totalorder %s238, %s241
      %p247 = scmp.eq.s32.totalorder %s20, 0
      %p248 = por %p246, %p247
      %p249 = scmp.ne.s32.totalorder %s238, %s241
      %p250 = scmp.eq.s32.totalorder %s25, 1
      %p251 = por %p249, %p250
      %p252 = scmp.ne.s32.totalorder %s241, %s242
      %p253 = scmp.eq.s32.totalorder %s25, 0
      %p254 = por %p252, %p253
      %p255 = scmp.ne.s32.totalorder %s241, %s242
      %p256 = scmp.eq.s32.totalorder %s26, 1
      %p257 = por %p255, %p256
      %p259 = scmp.ne.s32.totalorder %s242, %s258
      %p260 = scmp.eq.s32.totalorder %s26, 0
      %p261 = por %p259, %p260
      %p262 = scmp.le.s32.totalorder 1, %s20
      %p263 = scmp.lt.s32.totalorder %s20, 3
      %p264 = pnand %p262, %p263
      %p265 = pneg %p264
      // Predicated region
      $region9: #{tpu_custom_call.1} parent=5 // pred_check
        _
      $region10: #{tpu_custom_call.1} parent=5 // pred_check_branch
        %267 = sbr.rel (%p264) target = $region12
      $region11: #{tpu_custom_call.1} parent=5 // pred_region
        %s268 = ssub.s32 %s20, 1
        // Predicated region
        $region13: #{tpu_custom_call.1} parent=11 // pred_check
          %p269 = pneg %p79
        $region14: #{tpu_custom_call.1} parent=11 // pred_check_branch
          %271 = sbr.rel (%p269) target = $region16
        $region15: #{tpu_custom_call.1} parent=11 // pred_region
          %273 = vsyncadd [#allocation3], 0
          %s274 = sshll.u32 %s1, 4
          %s275 = int_to_ptr.hbm [resolvable:$true] %s274
          %s276 = sshll.u32 [#allocation2], 4
          %s277 = int_to_ptr.vmem [resolvable:$true] %s276
          %282 = dma.hbm_to_vmem [thread:$0]  %s275, 4608, %s277, [#allocation3], 512, 512, 32
        $region16: #{tpu_custom_call.1} parent=11 // pred_fallthru
          _
        // Predicated region
        $region17: #{tpu_custom_call.1} parent=11 // pred_check
          %p283 = pneg %p100
        $region18: #{tpu_custom_call.1} parent=11 // pred_check_branch
          %285 = sbr.rel (%p283) target = $region20
        $region19: #{tpu_custom_call.1} parent=11 // pred_region
          _
        $region20: #{tpu_custom_call.1} parent=11 // pred_fallthru
          _
        // Predicated region
        $region21: #{tpu_custom_call.1} parent=11 // pred_check
          %p286 = pneg %p121
        $region22: #{tpu_custom_call.1} parent=11 // pred_check_branch
          %288 = sbr.rel (%p286) target = $region24
        $region23: #{tpu_custom_call.1} parent=11 // pred_region
          %290 = vsyncadd [#allocation6], 0
          %s291 = sshll.u32 %s3, 4
          %s292 = int_to_ptr.hbm [resolvable:$true] %s291
          %s293 = sshll.u32 [#allocation5], 4
          %s294 = int_to_ptr.vmem [resolvable:$true] %s293
          %299 = dma.hbm_to_vmem [thread:$0]  %s292, 768, %s294, [#allocation6], 384, 384, 24
        $region24: #{tpu_custom_call.1} parent=11 // pred_fallthru
          _
        // Predicated region
        $region25: #{tpu_custom_call.1} parent=11 // pred_check
          %p300 = pneg %p142
        $region26: #{tpu_custom_call.1} parent=11 // pred_check_branch
          %302 = sbr.rel (%p300) target = $region28
        $region27: #{tpu_custom_call.1} parent=11 // pred_region
          _
        $region28: #{tpu_custom_call.1} parent=11 // pred_fallthru
          _
        // Predicated region
        $region29: #{tpu_custom_call.1} parent=11 // pred_check
          %p303 = pneg %p163
        $region30: #{tpu_custom_call.1} parent=11 // pred_check_branch
          %305 = sbr.rel (%p303) target = $region32
        $region31: #{tpu_custom_call.1} parent=11 // pred_region
          %307 = vsyncadd [#allocation6], 0
          %s308 = sshll.u32 %s5, 4
          %s309 = int_to_ptr.hbm [resolvable:$true] %s308
          %s310 = sshll.u32 [#allocation7], 4
          %s311 = int_to_ptr.vmem [resolvable:$true] %s310
          %316 = dma.hbm_to_vmem [thread:$0]  %s309, 6144, %s311, [#allocation6], 128, 128, 8
        $region32: #{tpu_custom_call.1} parent=11 // pred_fallthru
          _
        // Predicated region
        $region33: #{tpu_custom_call.1} parent=11 // pred_check
          %p317 = pneg %p184
        $region34: #{tpu_custom_call.1} parent=11 // pred_check_branch
          %319 = sbr.rel (%p317) target = $region36
        $region35: #{tpu_custom_call.1} parent=11 // pred_region
          _
        $region36: #{tpu_custom_call.1} parent=11 // pred_fallthru
          _
        // Predicated region
        $region37: #{tpu_custom_call.1} parent=11 // pred_check
          %p320 = pneg %p205
        $region38: #{tpu_custom_call.1} parent=11 // pred_check_branch
          %322 = sbr.rel (%p320) target = $region40
        $region39: #{tpu_custom_call.1} parent=11 // pred_region
          _
        $region40: #{tpu_custom_call.1} parent=11 // pred_fallthru
          _
        // Predicated region
        $region41: #{tpu_custom_call.1} parent=11 // pred_check
          %p323 = pneg %p226
        $region42: #{tpu_custom_call.1} parent=11 // pred_check_branch
          %325 = sbr.rel (%p323) target = $region44
        $region43: #{tpu_custom_call.1} parent=11 // pred_region
          _
        $region44: #{tpu_custom_call.1} parent=11 // pred_fallthru
          _
      $region12: #{tpu_custom_call.1} parent=5 // pred_fallthru
        _
      %p326 = scmp.lt.s32.totalorder %s20, 2
      // Predicated region
      $region45: #{tpu_custom_call.1} parent=5 // pred_check
        %p327 = pneg %p326
      $region46: #{tpu_custom_call.1} parent=5 // pred_check_branch
        %329 = sbr.rel (%p327) target = $region48
      $region47: #{tpu_custom_call.1} parent=5 // pred_region
        // Predicated region
        $region49: #{tpu_custom_call.1} parent=47 // pred_check
          %p330 = pneg %p52
        $region50: #{tpu_custom_call.1} parent=47 // pred_check_branch
          %332 = sbr.rel (%p330) target = $region52
        $region51: #{tpu_custom_call.1} parent=47 // pred_region
          %p333 = scmp.lt.s32.totalorder %s27, 1
          %s334 = scalar_select %p333, %s27, 1
          %s335 = smul.addr %s334, 3
          %s336 = smul.addr %s335, 8
          %s337 = scalar_lea.vmem %s0, %s336
        $region52: #{tpu_custom_call.1} parent=47 // pred_fallthru
          _
      $region48: #{tpu_custom_call.1} parent=5 // pred_fallthru
        _
      %p338 = scmp.le.s32.totalorder 1, %s20
      %p339 = scmp.lt.s32.totalorder %s20, 3
      %p340 = pnand %p338, %p339
      %p341 = pneg %p340
      // Predicated region
      $region53: #{tpu_custom_call.1} parent=5 // pred_check
        _
      $region54: #{tpu_custom_call.1} parent=5 // pred_check_branch
        %343 = sbr.rel (%p340) target = $region56
      $region55: #{tpu_custom_call.1} parent=5 // pred_region
        %s344 = ssub.s32 %s20, 1
        // Predicated region
        $region57: #{tpu_custom_call.1} parent=55 // pred_check
          %p345 = pneg %p79
        $region58: #{tpu_custom_call.1} parent=55 // pred_check_branch
          %347 = sbr.rel (%p345) target = $region60
        $region59: #{tpu_custom_call.1} parent=55 // pred_region
          %349 = dma.done [#allocation3], 4608
        $region60: #{tpu_custom_call.1} parent=55 // pred_fallthru
          _
        // Predicated region
        $region61: #{tpu_custom_call.1} parent=55 // pred_check
          %p350 = pneg %p121
        $region62: #{tpu_custom_call.1} parent=55 // pred_check_branch
          %352 = sbr.rel (%p350) target = $region64
        $region63: #{tpu_custom_call.1} parent=55 // pred_region
          %354 = dma.done [#allocation6], 768
        $region64: #{tpu_custom_call.1} parent=55 // pred_fallthru
          _
        // Predicated region
        $region65: #{tpu_custom_call.1} parent=55 // pred_check
          %p355 = pneg %p163
        $region66: #{tpu_custom_call.1} parent=55 // pred_check_branch
          %357 = sbr.rel (%p355) target = $region68
        $region67: #{tpu_custom_call.1} parent=55 // pred_region
          %359 = dma.done [#allocation6], 6144
        $region68: #{tpu_custom_call.1} parent=55 // pred_fallthru
          _
        %p360 = scmp.lt.s32.totalorder %s29, 1
        %s361 = scalar_select %p360, %s29, 1
        %s362 = smul.addr %s361, 3
        %s363 = smul.addr %s362, 8
        %s364 = scalar_lea.vmem %s0, %s363
        %p365 = pneg %p58
        %p366 = pneg %p55
        %p367 = pneg %p79
        %p368 = pneg %p76
        %p369 = pneg %p100
        %p370 = pneg %p97
        %p371 = pneg %p121
        %p372 = pneg %p118
        %p373 = pneg %p142
        %p374 = pneg %p139
        %p375 = pneg %p163
        %p376 = pneg %p160
        %p377 = pneg %p184
        %p378 = pneg %p181
        %p379 = pneg %p205
        %p380 = pneg %p202
        %p381 = pneg %p226
        %p382 = pneg %p223
        %p383 = pneg %p254
        %p384 = pneg %p251
        %s385 = sand.u32 %s241, 1
        %s386 = scalar_lea.sflag [#allocation4], %s385
        %s387 = sand.u32 %s241, 1
        %s388 = smul.addr %s387, 16
        %s389 = scalar_lea.vmem [#allocation8], %s388
        %p390 = scmp.lt.s32.totalorder %s29, 1
        %s391 = scalar_select %p390, %s29, 1
        %s392 = smul.addr %s391, 3
        %s393 = smul.addr %s392, 8
        %s394 = scalar_lea.vmem %s0, %s393
        %s395 = smul.u32 2, %s30
        %s396 = smul.u32 %s30, 16
        %v397 = vld [vmem:[#allocation2] sm:$0xff]
        %v398 = vld [vmem:[#allocation2 + $0x8] sm:$0xff]
        %v399 = vld [vmem:[#allocation2 + $0x10] sm:$0xff]
        %v400 = vld [vmem:[#allocation2 + $0x18] sm:$0xff]
        %v401 = vld [vmem:[#allocation2 + $0x20] sm:$0xff]
        %v402 = vld [vmem:[#allocation2 + $0x28] sm:$0xff]
        %v403 = vld [vmem:[#allocation2 + $0x30] sm:$0xff]
        %v404 = vld [vmem:[#allocation2 + $0x38] sm:$0xff]
        %v405 = vld [vmem:[#allocation2 + $0x40] sm:$0xff]
        %v406 = vld [vmem:[#allocation2 + $0x48] sm:$0xff]
        %v407 = vld [vmem:[#allocation2 + $0x50] sm:$0xff]
        %v408 = vld [vmem:[#allocation2 + $0x58] sm:$0xff]
        %v409 = vld [vmem:[#allocation2 + $0x60] sm:$0xff]
        %v410 = vld [vmem:[#allocation2 + $0x68] sm:$0xff]
        %v411 = vld [vmem:[#allocation2 + $0x70] sm:$0xff]
        %v412 = vld [vmem:[#allocation2 + $0x78] sm:$0xff]
        %v413 = vld [vmem:[#allocation2 + $0x80] sm:$0xff]
        %v414 = vld [vmem:[#allocation2 + $0x88] sm:$0xff]
        %v415 = vld [vmem:[#allocation2 + $0x90] sm:$0xff]
        %v416 = vld [vmem:[#allocation2 + $0x98] sm:$0xff]
        %v417 = vld [vmem:[#allocation2 + $0xa0] sm:$0xff]
        %v418 = vld [vmem:[#allocation2 + $0xa8] sm:$0xff]
        %v419 = vld [vmem:[#allocation2 + $0xb0] sm:$0xff]
        %v420 = vld [vmem:[#allocation2 + $0xb8] sm:$0xff]
        %v421 = vld [vmem:[#allocation2 + $0xc0] sm:$0xff]
        %v422 = vld [vmem:[#allocation2 + $0xc8] sm:$0xff]
        %v423 = vld [vmem:[#allocation2 + $0xd0] sm:$0xff]
        %v424 = vld [vmem:[#allocation2 + $0xd8] sm:$0xff]
        %v425 = vld [vmem:[#allocation2 + $0xe0] sm:$0xff]
        %v426 = vld [vmem:[#allocation2 + $0xe8] sm:$0xff]
        %v427 = vld [vmem:[#allocation2 + $0xf0] sm:$0xff]
        %v428 = vld [vmem:[#allocation2 + $0xf8] sm:$0xff]
        %v429 = vld [vmem:[#allocation2 + $0x100] sm:$0xff]
        %v430 = vld [vmem:[#allocation2 + $0x108] sm:$0xff]
        %v431 = vld [vmem:[#allocation2 + $0x110] sm:$0xff]
        %v432 = vld [vmem:[#allocation2 + $0x118] sm:$0xff]
        %v433 = vld [vmem:[%s2] sm:$0xf]
        %v434 = vld [vmem:[%s4] sm:$0x7]
        %v435 = vld [vmem:[#allocation7] sm:$0xff]
        %v436 = vld [vmem:[#allocation7 + $0x8] sm:$0xff]
        %v437 = vld [vmem:[#allocation7 + $0x10] sm:$0xff]
        %v438 = vld [vmem:[#allocation7 + $0x18] sm:$0xff]
        %v439 = vld [vmem:[#allocation7 + $0x20] sm:$0xff]
        %v440 = vld [vmem:[#allocation7 + $0x28] sm:$0xff]
        %v441 = vld [vmem:[#allocation7 + $0x30] sm:$0xff]
        %v442 = vld [vmem:[#allocation7 + $0x38] sm:$0xff]
        %v443 = vld [vmem:[#allocation7 + $0x40] sm:$0xff]
        %v444 = vld [vmem:[#allocation7 + $0x48] sm:$0xff]
        %v445 = vld [vmem:[#allocation7 + $0x50] sm:$0xff]
        %v446 = vld [vmem:[#allocation7 + $0x58] sm:$0xff]
        %v447 = vld [vmem:[#allocation7 + $0x60] sm:$0xff]
        %v448 = vld [vmem:[#allocation7 + $0x68] sm:$0xff]
        %v449 = vld [vmem:[#allocation7 + $0x70] sm:$0xff]
        %v450 = vld [vmem:[#allocation7 + $0x78] sm:$0xff]
        %v451 = vld [vmem:[#allocation7 + $0x80] sm:$0xff]
        %v452 = vld [vmem:[#allocation7 + $0x88] sm:$0xff]
        %v453 = vld [vmem:[#allocation7 + $0x90] sm:$0xff]
        %v454 = vld [vmem:[#allocation7 + $0x98] sm:$0xff]
        %v455 = vld [vmem:[#allocation7 + $0xa0] sm:$0xff]
        %v456 = vld [vmem:[#allocation7 + $0xa8] sm:$0xff]
        %v457 = vld [vmem:[#allocation7 + $0xb0] sm:$0xff]
        %v458 = vld [vmem:[#allocation7 + $0xb8] sm:$0xff]
        %v459 = vld [vmem:[#allocation7 + $0xc0] sm:$0xff]
        %v460 = vld [vmem:[#allocation7 + $0xc8] sm:$0xff]
        %v461 = vld [vmem:[#allocation7 + $0xd0] sm:$0xff]
        %v462 = vld [vmem:[#allocation7 + $0xd8] sm:$0xff]
        %v463 = vld [vmem:[#allocation7 + $0xe0] sm:$0xff]
        %v464 = vld [vmem:[#allocation7 + $0xe8] sm:$0xff]
        %v465 = vld [vmem:[#allocation7 + $0xf0] sm:$0xff]
        %v466 = vld [vmem:[#allocation7 + $0xf8] sm:$0xff]
        %v467 = vld [vmem:[#allocation7 + $0x100] sm:$0xff]
        %v468 = vld [vmem:[#allocation7 + $0x108] sm:$0xff]
        %v469 = vld [vmem:[#allocation7 + $0x110] sm:$0xff]
        %v470 = vld [vmem:[#allocation7 + $0x118] sm:$0xff]
        %v471 = vld [vmem:[#allocation7 + $0x120] sm:$0xff]
        %v472 = vld [vmem:[#allocation7 + $0x128] sm:$0xff]
        %v473 = vld [vmem:[#allocation7 + $0x130] sm:$0xff]
        %v474 = vld [vmem:[#allocation7 + $0x138] sm:$0xff]
        %v475 = vld [vmem:[#allocation7 + $0x140] sm:$0xff]
        %v476 = vld [vmem:[#allocation7 + $0x148] sm:$0xff]
        %v477 = vld [vmem:[#allocation7 + $0x150] sm:$0xff]
        %v478 = vld [vmem:[#allocation7 + $0x158] sm:$0xff]
        %v479 = vld [vmem:[#allocation7 + $0x160] sm:$0xff]
        %v480 = vld [vmem:[#allocation7 + $0x168] sm:$0xff]
        %v481 = vld [vmem:[#allocation7 + $0x170] sm:$0xff]
        %v482 = vld [vmem:[#allocation7 + $0x178] sm:$0xff]
        %v483 = vld [vmem:[%s6] sm:$0x1]
        %s484 = scalar_lea.vmem %s394, %s396
        %v485 = vld [vmem:[%s484] sm:$0xff]
        %v486 = vld [vmem:[%s484 + $0x8] sm:$0xff]
        %v487 = vld [vmem:[%s484 + $0x10] sm:$0x3]
        %v489 = vperm.slane %v433, 0
        %v490 = vperm.slane %v433, 1
        %v491 = vperm.slane %v433, 2
        %v492 = vperm.slane %v433, 3
        %vm497 = vcmask 588800
        %v499 = vsel %vm497, %v485, 0
        %v502 = vsel %vm497, %v486, 0
        %v505 = vsel %vm497, %v487, 0
        %507 = vmatpush.msra.mxu0 0.0
        %508 = vmatpush.msra.mxu0 0.0
        %509 = vmatpush.msra.mxu0 0.0
        %510 = vmatpush.msra.mxu0 0.0
        %511 = vmatpush.msra.mxu0 0.0
        %512 = vmatpush.msra.mxu0 0.0
        %513 = vmatpush.msra.mxu0 0.0
        %514 = vmatpush.msra.mxu0 %v429
        %515 = vmatpush.msra.mxu0 %v425
        %516 = vmatpush.msra.mxu0 %v421
        %517 = vmatpush.msra.mxu0 %v417
        %518 = vmatpush.msra.mxu0 %v413
        %519 = vmatpush.msra.mxu0 %v409
        %520 = vmatpush.msra.mxu0 %v405
        %521 = vmatpush.msra.mxu0 %v401
        %522 = vmatpush.msra.mxu0 %v397
        %523 = vmatmul.f32.gmra.mxu0 %v499
        %v524 = vpop.f32.mrf.mxu0
        %v525 = vadd.f32 %v489, %v524
        %526 = vmatmul.f32.gmra.mxu0 %v502
        %v527 = vpop.f32.mrf.mxu0
        %v528 = vadd.f32 %v489, %v527
        %529 = vmatmul.f32.gmra.mxu0 %v505
        %v530 = vpop.f32.mrf.mxu0
        %v531 = vadd.f32 %v489, %v530
        %532 = vdwg.mxu0
        %533 = vmatpush.msra.mxu0 0.0
        %534 = vmatpush.msra.mxu0 0.0
        %535 = vmatpush.msra.mxu0 0.0
        %536 = vmatpush.msra.mxu0 0.0
        %537 = vmatpush.msra.mxu0 0.0
        %538 = vmatpush.msra.mxu0 0.0
        %539 = vmatpush.msra.mxu0 0.0
        %540 = vmatpush.msra.mxu0 %v430
        %541 = vmatpush.msra.mxu0 %v426
        %542 = vmatpush.msra.mxu0 %v422
        %543 = vmatpush.msra.mxu0 %v418
        %544 = vmatpush.msra.mxu0 %v414
        %545 = vmatpush.msra.mxu0 %v410
        %546 = vmatpush.msra.mxu0 %v406
        %547 = vmatpush.msra.mxu0 %v402
        %548 = vmatpush.msra.mxu0 %v398
        %549 = vmatmul.f32.gmra.mxu0 %v499
        %v550 = vpop.f32.mrf.mxu0
        %v551 = vadd.f32 %v490, %v550
        %552 = vmatmul.f32.gmra.mxu0 %v502
        %v553 = vpop.f32.mrf.mxu0
        %v554 = vadd.f32 %v490, %v553
        %555 = vmatmul.f32.gmra.mxu0 %v505
        %v556 = vpop.f32.mrf.mxu0
        %v557 = vadd.f32 %v490, %v556
        %558 = vdwg.mxu0
        %559 = vmatpush.msra.mxu0 0.0
        %560 = vmatpush.msra.mxu0 0.0
        %561 = vmatpush.msra.mxu0 0.0
        %562 = vmatpush.msra.mxu0 0.0
        %563 = vmatpush.msra.mxu0 0.0
        %564 = vmatpush.msra.mxu0 0.0
        %565 = vmatpush.msra.mxu0 0.0
        %566 = vmatpush.msra.mxu0 %v431
        %567 = vmatpush.msra.mxu0 %v427
        %568 = vmatpush.msra.mxu0 %v423
        %569 = vmatpush.msra.mxu0 %v419
        %570 = vmatpush.msra.mxu0 %v415
        %571 = vmatpush.msra.mxu0 %v411
        %572 = vmatpush.msra.mxu0 %v407
        %573 = vmatpush.msra.mxu0 %v403
        %574 = vmatpush.msra.mxu0 %v399
        %575 = vmatmul.f32.gmra.mxu0 %v499
        %v576 = vpop.f32.mrf.mxu0
        %v577 = vadd.f32 %v491, %v576
        %578 = vmatmul.f32.gmra.mxu0 %v502
        %v579 = vpop.f32.mrf.mxu0
        %v580 = vadd.f32 %v491, %v579
        %581 = vmatmul.f32.gmra.mxu0 %v505
        %v582 = vpop.f32.mrf.mxu0
        %v583 = vadd.f32 %v491, %v582
        %584 = vdwg.mxu0
        %585 = vmatpush.msra.mxu0 0.0
        %586 = vmatpush.msra.mxu0 0.0
        %587 = vmatpush.msra.mxu0 0.0
        %588 = vmatpush.msra.mxu0 0.0
        %589 = vmatpush.msra.mxu0 0.0
        %590 = vmatpush.msra.mxu0 0.0
        %591 = vmatpush.msra.mxu0 0.0
        %592 = vmatpush.msra.mxu0 %v432
        %593 = vmatpush.msra.mxu0 %v428
        %594 = vmatpush.msra.mxu0 %v424
        %595 = vmatpush.msra.mxu0 %v420
        %596 = vmatpush.msra.mxu0 %v416
        %597 = vmatpush.msra.mxu0 %v412
        %598 = vmatpush.msra.mxu0 %v408
        %599 = vmatpush.msra.mxu0 %v404
        %600 = vmatpush.msra.mxu0 %v400
        %601 = vmatmul.f32.gmra.mxu0 %v499
        %v602 = vpop.f32.mrf.mxu0
        %v603 = vadd.f32 %v492, %v602
        %604 = vmatmul.f32.gmra.mxu0 %v502
        %v605 = vpop.f32.mrf.mxu0
        %v606 = vadd.f32 %v492, %v605
        %607 = vmatmul.f32.gmra.mxu0 %v505
        %v608 = vpop.f32.mrf.mxu0
        %v609 = vadd.f32 %v492, %v608
        %610 = vdwg.mxu0
        %v611 = vmax.f32 %v525, 0.0
        %v612 = vmax.f32 %v551, 0.0
        %v613 = vmax.f32 %v577, 0.0
        %v614 = vmax.f32 %v603, 0.0
        %v615 = vmax.f32 %v528, 0.0
        %v616 = vmax.f32 %v554, 0.0
        %v617 = vmax.f32 %v580, 0.0
        %v618 = vmax.f32 %v606, 0.0
        %v619 = vmax.f32 %v531, 0.0
        %v620 = vmax.f32 %v557, 0.0
        %v621 = vmax.f32 %v583, 0.0
        %v622 = vmax.f32 %v609, 0.0
        %v623 = vmin.f32 %v611, 6.0
        %v624 = vmin.f32 %v612, 6.0
        %v625 = vmin.f32 %v613, 6.0
        %v626 = vmin.f32 %v614, 6.0
        %v627 = vmin.f32 %v615, 6.0
        %v628 = vmin.f32 %v616, 6.0
        %v629 = vmin.f32 %v617, 6.0
        %v630 = vmin.f32 %v618, 6.0
        %v631 = vmin.f32 %v619, 6.0
        %v632 = vmin.f32 %v620, 6.0
        %v633 = vmin.f32 %v621, 6.0
        %v634 = vmin.f32 %v622, 6.0
        %v635 = vlaneseq
        %v636 = vshrl.u32 %v635, 7
        %v637 = vadd.s32 %v636, 8
        %v638 = vadd.s32 %v636, 16
        %v639 = vstv %s396
        %v640 = vadd.s32 %v636, %v639
        %v641 = vadd.s32 %v637, %v639
        %v642 = vadd.s32 %v638, %v639
        %vm643 = vcmp.gt.s32.totalorder %v640, 0
        %vm644 = vcmp.gt.s32.totalorder %v641, 0
        %vm645 = vcmp.gt.s32.totalorder %v642, 0
        %vm646 = vcmp.lt.s32.totalorder %v640, 17
        %vm647 = vcmp.lt.s32.totalorder %v641, 17
        %vm648 = vcmp.lt.s32.totalorder %v642, 17
        %vm649 = vmand %vm643, %vm646
        %vm650 = vmand %vm644, %vm647
        %vm651 = vmand %vm645, %vm648
        %v652 = vsel %vm649, 1, 0
        %v653 = vsel %vm650, 1, 0
        %v654 = vsel %vm651, 1, 0
        %vm655 = vcmp.eq.s32.totalorder %v652, 1
        %vm656 = vcmp.eq.s32.totalorder %v653, 1
        %vm657 = vcmp.eq.s32.totalorder %v654, 1
        %v658 = vsel %vm655, %v623, 0.0
        %v659 = vsel %vm655, %v624, 0.0
        %v660 = vsel %vm655, %v625, 0.0
        %v661 = vsel %vm655, %v626, 0.0
        %v662 = vsel %vm656, %v627, 0.0
        %v663 = vsel %vm656, %v628, 0.0
        %v664 = vsel %vm656, %v629, 0.0
        %v665 = vsel %vm656, %v630, 0.0
        %v666 = vsel %vm657, %v631, 0.0
        %v667 = vsel %vm657, %v632, 0.0
        %v668 = vsel %vm657, %v633, 0.0
        %v669 = vsel %vm657, %v634, 0.0
        %v670 = vld [vmem:[#allocation5] ss:$8 sm:$0x7]
        %v672 = vperm.slane %v670, 0
        %v673 = vperm.slane %v670, 1
        %v674 = vperm.slane %v670, 2
        %v678 = vmul.f32 %v658, %v672
        %v679 = vmul.f32 %v659, %v673
        %v680 = vmul.f32 %v660, %v674
        %v681 = vmul.f32 %v662, %v672
        %v682 = vmul.f32 %v663, %v673
        %v683 = vmul.f32 %v664, %v674
        %v684 = vadd.f32 %v678, 0.0
        %v685 = vadd.f32 %v679, 0.0
        %v686 = vadd.f32 %v680, 0.0
        %v687 = vadd.f32 %v681, 0.0
        %v688 = vadd.f32 %v682, 0.0
        %v689 = vadd.f32 %v683, 0.0
        %s690 = scalar_lea.vmem [#allocation5], 1
        %v691 = vld [vmem:[%s690] ss:$8 sm:$0x7]
        %v693 = vperm.slane %v691, 0
        %v694 = vperm.slane %v691, 1
        %v695 = vperm.slane %v691, 2
        %696 = vrot.lane.b32.xlu0 %v693, 24
        %v697 = vpop.permute.xlu0 %696
        %698 = vrot.lane.b32.xlu0 %v694, 24
        %v699 = vpop.permute.xlu0 %698
        %700 = vrot.lane.b32.xlu0 %v695, 24
        %v701 = vpop.permute.xlu0 %700
        %vm702 = vcmask 195584
        %v703 = vsel %vm702, %v697, %v699
        %v704 = vsel %vm702, %v699, %v701
        %v709 = vmul.f32 %v658, %v697
        %v710 = vmul.f32 %v659, %v703
        %v711 = vmul.f32 %v660, %v704
        %v712 = vmul.f32 %v661, %v701
        %v713 = vmul.f32 %v662, %v697
        %v714 = vmul.f32 %v663, %v703
        %v715 = vmul.f32 %v664, %v704
        %v716 = vmul.f32 %v665, %v701
        %725 = vrot.lane.b32.xlu0 %v709, 104
        %v726 = vpop.permute.xlu0 %725
        %727 = vrot.lane.b32.xlu0 %v710, 104
        %v728 = vpop.permute.xlu0 %727
        %729 = vrot.lane.b32.xlu0 %v711, 104
        %v730 = vpop.permute.xlu0 %729
        %731 = vrot.lane.b32.xlu0 %v712, 104
        %v732 = vpop.permute.xlu0 %731
        %733 = vrot.lane.b32.xlu0 %v713, 104
        %v734 = vpop.permute.xlu0 %733
        %735 = vrot.lane.b32.xlu0 %v714, 104
        %v736 = vpop.permute.xlu0 %735
        %737 = vrot.lane.b32.xlu0 %v715, 104
        %v738 = vpop.permute.xlu0 %737
        %739 = vrot.lane.b32.xlu0 %v716, 104
        %v740 = vpop.permute.xlu0 %739
        %vm741 = vcmask 850944
        %v742 = vsel %vm741, %v726, %v728
        %v743 = vsel %vm741, %v728, %v730
        %v744 = vsel %vm741, %v730, %v732
        %v745 = vsel %vm741, %v734, %v736
        %v746 = vsel %vm741, %v736, %v738
        %v747 = vsel %vm741, %v738, %v740
        %v754 = vadd.f32 %v684, %v742
        %v755 = vadd.f32 %v685, %v743
        %v756 = vadd.f32 %v686, %v744
        %v757 = vadd.f32 %v687, %v745
        %v758 = vadd.f32 %v688, %v746
        %v759 = vadd.f32 %v689, %v747
        %s760 = scalar_lea.vmem [#allocation5], 2
        %v761 = vld [vmem:[%s760] ss:$8 sm:$0x7]
        %v763 = vperm.slane %v761, 0
        %v764 = vperm.slane %v761, 1
        %v765 = vperm.slane %v761, 2
        %766 = vrot.lane.b32.xlu0 %v763, 48
        %v767 = vpop.permute.xlu0 %766
        %768 = vrot.lane.b32.xlu0 %v764, 48
        %v769 = vpop.permute.xlu0 %768
        %770 = vrot.lane.b32.xlu0 %v765, 48
        %v771 = vpop.permute.xlu0 %770
        %vm772 = vcmask 392192
        %v773 = vsel %vm772, %v767, %v769
        %v774 = vsel %vm772, %v769, %v771
        %v779 = vmul.f32 %v658, %v767
        %v780 = vmul.f32 %v659, %v773
        %v781 = vmul.f32 %v660, %v774
        %v782 = vmul.f32 %v661, %v771
        %v783 = vmul.f32 %v662, %v767
        %v784 = vmul.f32 %v663, %v773
        %v785 = vmul.f32 %v664, %v774
        %v786 = vmul.f32 %v665, %v771
        %795 = vrot.lane.b32.xlu0 %v779, 80
        %v796 = vpop.permute.xlu0 %795
        %797 = vrot.lane.b32.xlu0 %v780, 80
        %v798 = vpop.permute.xlu0 %797
        %799 = vrot.lane.b32.xlu0 %v781, 80
        %v800 = vpop.permute.xlu0 %799
        %801 = vrot.lane.b32.xlu0 %v782, 80
        %v802 = vpop.permute.xlu0 %801
        %803 = vrot.lane.b32.xlu0 %v783, 80
        %v804 = vpop.permute.xlu0 %803
        %805 = vrot.lane.b32.xlu0 %v784, 80
        %v806 = vpop.permute.xlu0 %805
        %807 = vrot.lane.b32.xlu0 %v785, 80
        %v808 = vpop.permute.xlu0 %807
        %809 = vrot.lane.b32.xlu0 %v786, 80
        %v810 = vpop.permute.xlu0 %809
        %vm811 = vcmask 654336
        %v812 = vsel %vm811, %v796, %v798
        %v813 = vsel %vm811, %v798, %v800
        %v814 = vsel %vm811, %v800, %v802
        %v815 = vsel %vm811, %v804, %v806
        %v816 = vsel %vm811, %v806, %v808
        %v817 = vsel %vm811, %v808, %v810
        %v824 = vadd.f32 %v754, %v812
        %v825 = vadd.f32 %v755, %v813
        %v826 = vadd.f32 %v756, %v814
        %v827 = vadd.f32 %v757, %v815
        %v828 = vadd.f32 %v758, %v816
        %v829 = vadd.f32 %v759, %v817
        %s830 = scalar_lea.vmem [#allocation5], 3
        %v831 = vld [vmem:[%s830] ss:$8 sm:$0x7]
        %v833 = vperm.slane %v831, 0
        %v834 = vperm.slane %v831, 1
        %v835 = vperm.slane %v831, 2
        %v839 = vmul.f32 %v658, %v833
        %v840 = vmul.f32 %v659, %v834
        %v841 = vmul.f32 %v660, %v835
        %v842 = vmul.f32 %v662, %v833
        %v843 = vmul.f32 %v663, %v834
        %v844 = vmul.f32 %v664, %v835
        %v845 = vmul.f32 %v666, %v833
        %v846 = vmul.f32 %v667, %v834
        %v847 = vmul.f32 %v668, %v835
        %vm857 = vcmask 1046528
        %v858 = vrot.slane %v839, 1
        %v859 = vrot.slane %v842, 1
        %v860 = vsel %vm857, %v858, %v859
        %v861 = vrot.slane %v840, 1
        %v862 = vrot.slane %v843, 1
        %v863 = vsel %vm857, %v861, %v862
        %v864 = vrot.slane %v841, 1
        %v865 = vrot.slane %v844, 1
        %v866 = vsel %vm857, %v864, %v865
        %v867 = vrot.slane %v845, 1
        %v868 = vsel %vm857, %v859, %v867
        %v869 = vrot.slane %v846, 1
        %v870 = vsel %vm857, %v862, %v869
        %v871 = vrot.slane %v847, 1
        %v872 = vsel %vm857, %v865, %v871
        %v879 = vadd.f32 %v824, %v860
        %v880 = vadd.f32 %v825, %v863
        %v881 = vadd.f32 %v826, %v866
        %v882 = vadd.f32 %v827, %v868
        %v883 = vadd.f32 %v828, %v870
        %v884 = vadd.f32 %v829, %v872
        %s885 = scalar_lea.vmem [#allocation5], 4
        %v886 = vld [vmem:[%s885] ss:$8 sm:$0x7]
        %v888 = vperm.slane %v886, 0
        %v889 = vperm.slane %v886, 1
        %v890 = vperm.slane %v886, 2
        %891 = vrot.lane.b32.xlu0 %v888, 24
        %v892 = vpop.permute.xlu0 %891
        %893 = vrot.lane.b32.xlu0 %v889, 24
        %v894 = vpop.permute.xlu0 %893
        %895 = vrot.lane.b32.xlu0 %v890, 24
        %v896 = vpop.permute.xlu0 %895
        %v897 = vsel %vm702, %v892, %v894
        %v898 = vsel %vm702, %v894, %v896
        %v903 = vmul.f32 %v658, %v892
        %v904 = vmul.f32 %v659, %v897
        %v905 = vmul.f32 %v660, %v898
        %v906 = vmul.f32 %v661, %v896
        %v907 = vmul.f32 %v662, %v892
        %v908 = vmul.f32 %v663, %v897
        %v909 = vmul.f32 %v664, %v898
        %v910 = vmul.f32 %v665, %v896
        %v911 = vmul.f32 %v666, %v892
        %v912 = vmul.f32 %v667, %v897
        %v913 = vmul.f32 %v668, %v898
        %v914 = vmul.f32 %v669, %v896
        %v927 = vrot.slane %v903, 1
        %v928 = vrot.slane %v907, 1
        %v929 = vsel %vm857, %v927, %v928
        %v930 = vrot.slane %v904, 1
        %v931 = vrot.slane %v908, 1
        %v932 = vsel %vm857, %v930, %v931
        %v933 = vrot.slane %v905, 1
        %v934 = vrot.slane %v909, 1
        %v935 = vsel %vm857, %v933, %v934
        %v936 = vrot.slane %v906, 1
        %v937 = vrot.slane %v910, 1
        %v938 = vsel %vm857, %v936, %v937
        %v939 = vrot.slane %v911, 1
        %v940 = vsel %vm857, %v928, %v939
        %v941 = vrot.slane %v912, 1
        %v942 = vsel %vm857, %v931, %v941
        %v943 = vrot.slane %v913, 1
        %v944 = vsel %vm857, %v934, %v943
        %v945 = vrot.slane %v914, 1
        %v946 = vsel %vm857, %v937, %v945
        %947 = vrot.lane.b32.xlu0 %v929, 104
        %v948 = vpop.permute.xlu0 %947
        %949 = vrot.lane.b32.xlu0 %v932, 104
        %v950 = vpop.permute.xlu0 %949
        %951 = vrot.lane.b32.xlu0 %v935, 104
        %v952 = vpop.permute.xlu0 %951
        %953 = vrot.lane.b32.xlu0 %v938, 104
        %v954 = vpop.permute.xlu0 %953
        %955 = vrot.lane.b32.xlu0 %v940, 104
        %v956 = vpop.permute.xlu0 %955
        %957 = vrot.lane.b32.xlu0 %v942, 104
        %v958 = vpop.permute.xlu0 %957
        %959 = vrot.lane.b32.xlu0 %v944, 104
        %v960 = vpop.permute.xlu0 %959
        %961 = vrot.lane.b32.xlu0 %v946, 104
        %v962 = vpop.permute.xlu0 %961
        %v963 = vsel %vm741, %v948, %v950
        %v964 = vsel %vm741, %v950, %v952
        %v965 = vsel %vm741, %v952, %v954
        %v966 = vsel %vm741, %v956, %v958
        %v967 = vsel %vm741, %v958, %v960
        %v968 = vsel %vm741, %v960, %v962
        %v975 = vadd.f32 %v879, %v963
        %v976 = vadd.f32 %v880, %v964
        %v977 = vadd.f32 %v881, %v965
        %v978 = vadd.f32 %v882, %v966
        %v979 = vadd.f32 %v883, %v967
        %v980 = vadd.f32 %v884, %v968
        %s981 = scalar_lea.vmem [#allocation5], 5
        %v982 = vld [vmem:[%s981] ss:$8 sm:$0x7]
        %v984 = vperm.slane %v982, 0
        %v985 = vperm.slane %v982, 1
        %v986 = vperm.slane %v982, 2
        %987 = vrot.lane.b32.xlu0 %v984, 48
        %v988 = vpop.permute.xlu0 %987
        %989 = vrot.lane.b32.xlu0 %v985, 48
        %v990 = vpop.permute.xlu0 %989
        %991 = vrot.lane.b32.xlu0 %v986, 48
        %v992 = vpop.permute.xlu0 %991
        %v993 = vsel %vm772, %v988, %v990
        %v994 = vsel %vm772, %v990, %v992
        %v999 = vmul.f32 %v658, %v988
        %v1000 = vmul.f32 %v659, %v993
        %v1001 = vmul.f32 %v660, %v994
        %v1002 = vmul.f32 %v661, %v992
        %v1003 = vmul.f32 %v662, %v988
        %v1004 = vmul.f32 %v663, %v993
        %v1005 = vmul.f32 %v664, %v994
        %v1006 = vmul.f32 %v665, %v992
        %v1007 = vmul.f32 %v666, %v988
        %v1008 = vmul.f32 %v667, %v993
        %v1009 = vmul.f32 %v668, %v994
        %v1010 = vmul.f32 %v669, %v992
        %v1023 = vrot.slane %v999, 1
        %v1024 = vrot.slane %v1003, 1
        %v1025 = vsel %vm857, %v1023, %v1024
        %v1026 = vrot.slane %v1000, 1
        %v1027 = vrot.slane %v1004, 1
        %v1028 = vsel %vm857, %v1026, %v1027
        %v1029 = vrot.slane %v1001, 1
        %v1030 = vrot.slane %v1005, 1
        %v1031 = vsel %vm857, %v1029, %v1030
        %v1032 = vrot.slane %v1002, 1
        %v1033 = vrot.slane %v1006, 1
        %v1034 = vsel %vm857, %v1032, %v1033
        %v1035 = vrot.slane %v1007, 1
        %v1036 = vsel %vm857, %v1024, %v1035
        %v1037 = vrot.slane %v1008, 1
        %v1038 = vsel %vm857, %v1027, %v1037
        %v1039 = vrot.slane %v1009, 1
        %v1040 = vsel %vm857, %v1030, %v1039
        %v1041 = vrot.slane %v1010, 1
        %v1042 = vsel %vm857, %v1033, %v1041
        %1043 = vrot.lane.b32.xlu0 %v1025, 80
        %v1044 = vpop.permute.xlu0 %1043
        %1045 = vrot.lane.b32.xlu0 %v1028, 80
        %v1046 = vpop.permute.xlu0 %1045
        %1047 = vrot.lane.b32.xlu0 %v1031, 80
        %v1048 = vpop.permute.xlu0 %1047
        %1049 = vrot.lane.b32.xlu0 %v1034, 80
        %v1050 = vpop.permute.xlu0 %1049
        %1051 = vrot.lane.b32.xlu0 %v1036, 80
        %v1052 = vpop.permute.xlu0 %1051
        %1053 = vrot.lane.b32.xlu0 %v1038, 80
        %v1054 = vpop.permute.xlu0 %1053
        %1055 = vrot.lane.b32.xlu0 %v1040, 80
        %v1056 = vpop.permute.xlu0 %1055
        %1057 = vrot.lane.b32.xlu0 %v1042, 80
        %v1058 = vpop.permute.xlu0 %1057
        %v1059 = vsel %vm811, %v1044, %v1046
        %v1060 = vsel %vm811, %v1046, %v1048
        %v1061 = vsel %vm811, %v1048, %v1050
        %v1062 = vsel %vm811, %v1052, %v1054
        %v1063 = vsel %vm811, %v1054, %v1056
        %v1064 = vsel %vm811, %v1056, %v1058
        %v1071 = vadd.f32 %v975, %v1059
        %v1072 = vadd.f32 %v976, %v1060
        %v1073 = vadd.f32 %v977, %v1061
        %v1074 = vadd.f32 %v978, %v1062
        %v1075 = vadd.f32 %v979, %v1063
        %v1076 = vadd.f32 %v980, %v1064
        %s1077 = scalar_lea.vmem [#allocation5], 6
        %v1078 = vld [vmem:[%s1077] ss:$8 sm:$0x7]
        %v1080 = vperm.slane %v1078, 0
        %v1081 = vperm.slane %v1078, 1
        %v1082 = vperm.slane %v1078, 2
        %v1086 = vmul.f32 %v658, %v1080
        %v1087 = vmul.f32 %v659, %v1081
        %v1088 = vmul.f32 %v660, %v1082
        %v1089 = vmul.f32 %v662, %v1080
        %v1090 = vmul.f32 %v663, %v1081
        %v1091 = vmul.f32 %v664, %v1082
        %v1092 = vmul.f32 %v666, %v1080
        %v1093 = vmul.f32 %v667, %v1081
        %v1094 = vmul.f32 %v668, %v1082
        %vm1104 = vcmask 1045504
        %v1105 = vrot.slane %v1086, 2
        %v1106 = vrot.slane %v1089, 2
        %v1107 = vsel %vm1104, %v1105, %v1106
        %v1108 = vrot.slane %v1087, 2
        %v1109 = vrot.slane %v1090, 2
        %v1110 = vsel %vm1104, %v1108, %v1109
        %v1111 = vrot.slane %v1088, 2
        %v1112 = vrot.slane %v1091, 2
        %v1113 = vsel %vm1104, %v1111, %v1112
        %v1114 = vrot.slane %v1092, 2
        %v1115 = vsel %vm1104, %v1106, %v1114
        %v1116 = vrot.slane %v1093, 2
        %v1117 = vsel %vm1104, %v1109, %v1116
        %v1118 = vrot.slane %v1094, 2
        %v1119 = vsel %vm1104, %v1112, %v1118
        %v1126 = vadd.f32 %v1071, %v1107
        %v1127 = vadd.f32 %v1072, %v1110
        %v1128 = vadd.f32 %v1073, %v1113
        %v1129 = vadd.f32 %v1074, %v1115
        %v1130 = vadd.f32 %v1075, %v1117
        %v1131 = vadd.f32 %v1076, %v1119
        %s1132 = scalar_lea.vmem [#allocation5], 7
        %v1133 = vld [vmem:[%s1132] ss:$8 sm:$0x7]
        %v1135 = vperm.slane %v1133, 0
        %v1136 = vperm.slane %v1133, 1
        %v1137 = vperm.slane %v1133, 2
        %1138 = vrot.lane.b32.xlu0 %v1135, 24
        %v1139 = vpop.permute.xlu0 %1138
        %1140 = vrot.lane.b32.xlu0 %v1136, 24
        %v1141 = vpop.permute.xlu0 %1140
        %1142 = vrot.lane.b32.xlu0 %v1137, 24
        %v1143 = vpop.permute.xlu0 %1142
        %v1144 = vsel %vm702, %v1139, %v1141
        %v1145 = vsel %vm702, %v1141, %v1143
        %v1150 = vmul.f32 %v658, %v1139
        %v1151 = vmul.f32 %v659, %v1144
        %v1152 = vmul.f32 %v660, %v1145
        %v1153 = vmul.f32 %v661, %v1143
        %v1154 = vmul.f32 %v662, %v1139
        %v1155 = vmul.f32 %v663, %v1144
        %v1156 = vmul.f32 %v664, %v1145
        %v1157 = vmul.f32 %v665, %v1143
        %v1158 = vmul.f32 %v666, %v1139
        %v1159 = vmul.f32 %v667, %v1144
        %v1160 = vmul.f32 %v668, %v1145
        %v1161 = vmul.f32 %v669, %v1143
        %v1174 = vrot.slane %v1150, 2
        %v1175 = vrot.slane %v1154, 2
        %v1176 = vsel %vm1104, %v1174, %v1175
        %v1177 = vrot.slane %v1151, 2
        %v1178 = vrot.slane %v1155, 2
        %v1179 = vsel %vm1104, %v1177, %v1178
        %v1180 = vrot.slane %v1152, 2
        %v1181 = vrot.slane %v1156, 2
        %v1182 = vsel %vm1104, %v1180, %v1181
        %v1183 = vrot.slane %v1153, 2
        %v1184 = vrot.slane %v1157, 2
        %v1185 = vsel %vm1104, %v1183, %v1184
        %v1186 = vrot.slane %v1158, 2
        %v1187 = vsel %vm1104, %v1175, %v1186
        %v1188 = vrot.slane %v1159, 2
        %v1189 = vsel %vm1104, %v1178, %v1188
        %v1190 = vrot.slane %v1160, 2
        %v1191 = vsel %vm1104, %v1181, %v1190
        %v1192 = vrot.slane %v1161, 2
        %v1193 = vsel %vm1104, %v1184, %v1192
        %1194 = vrot.lane.b32.xlu0 %v1176, 104
        %v1195 = vpop.permute.xlu0 %1194
        %1196 = vrot.lane.b32.xlu0 %v1179, 104
        %v1197 = vpop.permute.xlu0 %1196
        %1198 = vrot.lane.b32.xlu0 %v1182, 104
        %v1199 = vpop.permute.xlu0 %1198
        %1200 = vrot.lane.b32.xlu0 %v1185, 104
        %v1201 = vpop.permute.xlu0 %1200
        %1202 = vrot.lane.b32.xlu0 %v1187, 104
        %v1203 = vpop.permute.xlu0 %1202
        %1204 = vrot.lane.b32.xlu0 %v1189, 104
        %v1205 = vpop.permute.xlu0 %1204
        %1206 = vrot.lane.b32.xlu0 %v1191, 104
        %v1207 = vpop.permute.xlu0 %1206
        %1208 = vrot.lane.b32.xlu0 %v1193, 104
        %v1209 = vpop.permute.xlu0 %1208
        %v1210 = vsel %vm741, %v1195, %v1197
        %v1211 = vsel %vm741, %v1197, %v1199
        %v1212 = vsel %vm741, %v1199, %v1201
        %v1213 = vsel %vm741, %v1203, %v1205
        %v1214 = vsel %vm741, %v1205, %v1207
        %v1215 = vsel %vm741, %v1207, %v1209
        %v1222 = vadd.f32 %v1126, %v1210
        %v1223 = vadd.f32 %v1127, %v1211
        %v1224 = vadd.f32 %v1128, %v1212
        %v1225 = vadd.f32 %v1129, %v1213
        %v1226 = vadd.f32 %v1130, %v1214
        %v1227 = vadd.f32 %v1131, %v1215
        %s1228 = scalar_lea.vmem [#allocation5], 24
        %v1229 = vld [vmem:[%s1228] ss:$8 sm:$0x7]
        %v1231 = vperm.slane %v1229, 0
        %v1232 = vperm.slane %v1229, 1
        %v1233 = vperm.slane %v1229, 2
        %1234 = vrot.lane.b32.xlu0 %v1231, 48
        %v1235 = vpop.permute.xlu0 %1234
        %1236 = vrot.lane.b32.xlu0 %v1232, 48
        %v1237 = vpop.permute.xlu0 %1236
        %1238 = vrot.lane.b32.xlu0 %v1233, 48
        %v1239 = vpop.permute.xlu0 %1238
        %v1240 = vsel %vm772, %v1235, %v1237
        %v1241 = vsel %vm772, %v1237, %v1239
        %v1246 = vmul.f32 %v658, %v1235
        %v1247 = vmul.f32 %v659, %v1240
        %v1248 = vmul.f32 %v660, %v1241
        %v1249 = vmul.f32 %v661, %v1239
        %v1250 = vmul.f32 %v662, %v1235
        %v1251 = vmul.f32 %v663, %v1240
        %v1252 = vmul.f32 %v664, %v1241
        %v1253 = vmul.f32 %v665, %v1239
        %v1254 = vmul.f32 %v666, %v1235
        %v1255 = vmul.f32 %v667, %v1240
        %v1256 = vmul.f32 %v668, %v1241
        %v1257 = vmul.f32 %v669, %v1239
        %v1270 = vrot.slane %v1246, 2
        %v1271 = vrot.slane %v1250, 2
        %v1272 = vsel %vm1104, %v1270, %v1271
        %v1273 = vrot.slane %v1247, 2
        %v1274 = vrot.slane %v1251, 2
        %v1275 = vsel %vm1104, %v1273, %v1274
        %v1276 = vrot.slane %v1248, 2
        %v1277 = vrot.slane %v1252, 2
        %v1278 = vsel %vm1104, %v1276, %v1277
        %v1279 = vrot.slane %v1249, 2
        %v1280 = vrot.slane %v1253, 2
        %v1281 = vsel %vm1104, %v1279, %v1280
        %v1282 = vrot.slane %v1254, 2
        %v1283 = vsel %vm1104, %v1271, %v1282
        %v1284 = vrot.slane %v1255, 2
        %v1285 = vsel %vm1104, %v1274, %v1284
        %v1286 = vrot.slane %v1256, 2
        %v1287 = vsel %vm1104, %v1277, %v1286
        %v1288 = vrot.slane %v1257, 2
        %v1289 = vsel %vm1104, %v1280, %v1288
        %1290 = vrot.lane.b32.xlu0 %v1272, 80
        %v1291 = vpop.permute.xlu0 %1290
        %1292 = vrot.lane.b32.xlu0 %v1275, 80
        %v1293 = vpop.permute.xlu0 %1292
        %1294 = vrot.lane.b32.xlu0 %v1278, 80
        %v1295 = vpop.permute.xlu0 %1294
        %1296 = vrot.lane.b32.xlu0 %v1281, 80
        %v1297 = vpop.permute.xlu0 %1296
        %1298 = vrot.lane.b32.xlu0 %v1283, 80
        %v1299 = vpop.permute.xlu0 %1298
        %1300 = vrot.lane.b32.xlu0 %v1285, 80
        %v1301 = vpop.permute.xlu0 %1300
        %1302 = vrot.lane.b32.xlu0 %v1287, 80
        %v1303 = vpop.permute.xlu0 %1302
        %1304 = vrot.lane.b32.xlu0 %v1289, 80
        %v1305 = vpop.permute.xlu0 %1304
        %v1306 = vsel %vm811, %v1291, %v1293
        %v1307 = vsel %vm811, %v1293, %v1295
        %v1308 = vsel %vm811, %v1295, %v1297
        %v1309 = vsel %vm811, %v1299, %v1301
        %v1310 = vsel %vm811, %v1301, %v1303
        %v1311 = vsel %vm811, %v1303, %v1305
        %v1318 = vadd.f32 %v1222, %v1306
        %v1319 = vadd.f32 %v1223, %v1307
        %v1320 = vadd.f32 %v1224, %v1308
        %v1321 = vadd.f32 %v1225, %v1309
        %v1322 = vadd.f32 %v1226, %v1310
        %v1323 = vadd.f32 %v1227, %v1311
        %v1325 = vperm.slane %v434, 0
        %v1326 = vperm.slane %v434, 1
        %v1327 = vperm.slane %v434, 2
        %v1331 = vadd.f32 %v1318, %v1325
        %v1332 = vadd.f32 %v1319, %v1326
        %v1333 = vadd.f32 %v1320, %v1327
        %v1334 = vadd.f32 %v1321, %v1325
        %v1335 = vadd.f32 %v1322, %v1326
        %v1336 = vadd.f32 %v1323, %v1327
        %v1337 = vmax.f32 %v1331, 0.0
        %v1338 = vmax.f32 %v1332, 0.0
        %v1339 = vmax.f32 %v1333, 0.0
        %v1340 = vmax.f32 %v1334, 0.0
        %v1341 = vmax.f32 %v1335, 0.0
        %v1342 = vmax.f32 %v1336, 0.0
        %v1343 = vmin.f32 %v1337, 6.0
        %v1344 = vmin.f32 %v1338, 6.0
        %v1345 = vmin.f32 %v1339, 6.0
        %v1346 = vmin.f32 %v1340, 6.0
        %v1347 = vmin.f32 %v1341, 6.0
        %v1348 = vmin.f32 %v1342, 6.0
        %v1350 = vperm.slane %v483, 0
        %1352 = vmatpush.msra.mxu0 %v450
        %1353 = vmatpush.msra.mxu0 %v449
        %1354 = vmatpush.msra.mxu0 %v448
        %1355 = vmatpush.msra.mxu0 %v447
        %1356 = vmatpush.msra.mxu0 %v446
        %1357 = vmatpush.msra.mxu0 %v445
        %1358 = vmatpush.msra.mxu0 %v444
        %1359 = vmatpush.msra.mxu0 %v443
        %1360 = vmatpush.msra.mxu0 %v442
        %1361 = vmatpush.msra.mxu0 %v441
        %1362 = vmatpush.msra.mxu0 %v440
        %1363 = vmatpush.msra.mxu0 %v439
        %1364 = vmatpush.msra.mxu0 %v438
        %1365 = vmatpush.msra.mxu0 %v437
        %1366 = vmatpush.msra.mxu0 %v436
        %1367 = vmatpush.msra.mxu0 %v435
        %1368 = vmatmul.f32.gmra.mxu0 %v1343
        %v1369 = vpop.f32.mrf.mxu0
        %v1370 = vadd.f32 %v1350, %v1369
        %1371 = vmatmul.f32.gmra.mxu0 %v1346
        %v1372 = vpop.f32.mrf.mxu0
        %v1373 = vadd.f32 %v1350, %v1372
        %1374 = vdwg.mxu0
        %1375 = vmatpush.msra.mxu0 %v466
        %1376 = vmatpush.msra.mxu0 %v465
        %1377 = vmatpush.msra.mxu0 %v464
        %1378 = vmatpush.msra.mxu0 %v463
        %1379 = vmatpush.msra.mxu0 %v462
        %1380 = vmatpush.msra.mxu0 %v461
        %1381 = vmatpush.msra.mxu0 %v460
        %1382 = vmatpush.msra.mxu0 %v459
        %1383 = vmatpush.msra.mxu0 %v458
        %1384 = vmatpush.msra.mxu0 %v457
        %1385 = vmatpush.msra.mxu0 %v456
        %1386 = vmatpush.msra.mxu0 %v455
        %1387 = vmatpush.msra.mxu0 %v454
        %1388 = vmatpush.msra.mxu0 %v453
        %1389 = vmatpush.msra.mxu0 %v452
        %1390 = vmatpush.msra.mxu0 %v451
        %1391 = vmatmul.f32.gmra.mxu0 %v1344
        %v1392 = vpop.f32.mrf.mxu0
        %v1393 = vadd.f32 %v1370, %v1392
        %1394 = vmatmul.f32.gmra.mxu0 %v1347
        %v1395 = vpop.f32.mrf.mxu0
        %v1396 = vadd.f32 %v1373, %v1395
        %1397 = vdwg.mxu0
        %1398 = vmatpush.msra.mxu0 %v482
        %1399 = vmatpush.msra.mxu0 %v481
        %1400 = vmatpush.msra.mxu0 %v480
        %1401 = vmatpush.msra.mxu0 %v479
        %1402 = vmatpush.msra.mxu0 %v478
        %1403 = vmatpush.msra.mxu0 %v477
        %1404 = vmatpush.msra.mxu0 %v476
        %1405 = vmatpush.msra.mxu0 %v475
        %1406 = vmatpush.msra.mxu0 %v474
        %1407 = vmatpush.msra.mxu0 %v473
        %1408 = vmatpush.msra.mxu0 %v472
        %1409 = vmatpush.msra.mxu0 %v471
        %1410 = vmatpush.msra.mxu0 %v470
        %1411 = vmatpush.msra.mxu0 %v469
        %1412 = vmatpush.msra.mxu0 %v468
        %1413 = vmatpush.msra.mxu0 %v467
        %1414 = vmatmul.f32.gmra.mxu0 %v1345
        %v1415 = vpop.f32.mrf.mxu0
        %v1416 = vadd.f32 %v1393, %v1415
        %1417 = vmatmul.f32.gmra.mxu0 %v1348
        %v1418 = vpop.f32.mrf.mxu0
        %v1419 = vadd.f32 %v1396, %v1418
        %1420 = vdwg.mxu0
        %s1421 = sadd.s32 %s396, 1
        %s1422 = scalar_lea.vmem %s394, %s1421
        %v1423 = vld [vmem:[%s1422] sm:$0xff]
        %v1424 = vld [vmem:[%s1422 + $0x8] sm:$0xff]
        %v1425 = vld [vmem:[%s7] sm:$0xff]
        %v1426 = vld [vmem:[%s7 + $0x8] sm:$0xff]
        %v1427 = vld [vmem:[%s7 + $0x10] sm:$0xff]
        %v1428 = vld [vmem:[%s7 + $0x18] sm:$0xff]
        %v1429 = vld [vmem:[%s7 + $0x20] sm:$0xff]
        %v1430 = vld [vmem:[%s7 + $0x28] sm:$0xff]
        %v1431 = vld [vmem:[%s7 + $0x30] sm:$0xff]
        %v1432 = vld [vmem:[%s7 + $0x38] sm:$0xff]
        %v1433 = vld [vmem:[%s7 + $0x40] sm:$0xff]
        %v1435 = vsel %vm497, %v1423, 0
        %v1438 = vsel %vm497, %v1424, 0
        %1440 = vmatpush.msra.mxu0 0.0
        %1441 = vmatpush.msra.mxu0 0.0
        %1442 = vmatpush.msra.mxu0 0.0
        %1443 = vmatpush.msra.mxu0 0.0
        %1444 = vmatpush.msra.mxu0 0.0
        %1445 = vmatpush.msra.mxu0 0.0
        %1446 = vmatpush.msra.mxu0 0.0
        %1447 = vmatpush.msra.mxu0 %v1433
        %1448 = vmatpush.msra.mxu0 %v1432
        %1449 = vmatpush.msra.mxu0 %v1431
        %1450 = vmatpush.msra.mxu0 %v1430
        %1451 = vmatpush.msra.mxu0 %v1429
        %1452 = vmatpush.msra.mxu0 %v1428
        %1453 = vmatpush.msra.mxu0 %v1427
        %1454 = vmatpush.msra.mxu0 %v1426
        %1455 = vmatpush.msra.mxu0 %v1425
        %1456 = vmatmul.f32.gmra.mxu0 %v1435
        %v1457 = vpop.f32.mrf.mxu0
        %v1458 = vadd.f32 0.0, %v1457
        %1459 = vmatmul.f32.gmra.mxu0 %v1438
        %v1460 = vpop.f32.mrf.mxu0
        %v1461 = vadd.f32 0.0, %v1460
        %1462 = vdwg.mxu0
        %v1463 = vadd.f32 %v1416, %v1458
        %v1464 = vadd.f32 %v1419, %v1461
        %v1465 = vld [vmem:[%s8] sm:$0x1]
        %v1467 = vperm.slane %v1465, 0
        %v1469 = vadd.f32 %v1463, %v1467
        %v1470 = vadd.f32 %v1464, %v1467
        %1471 = vst [vmem:[%s389] sm:$0xff] %v1469
        %1472 = vst [vmem:[%s389 + $0x8] sm:$0xff] %v1470
        %s1473 = sand.u32 %s241, 1
        %s1474 = scalar_lea.sflag [#allocation4], %s1473
        %s1475 = sand.u32 %s241, 1
        %s1476 = smul.addr %s1475, 16
        %s1477 = scalar_lea.vmem [#allocation8], %s1476
        // Predicated region
        $region69: #{tpu_custom_call.1} parent=55 // pred_check
          %p1478 = pneg %p251
        $region70: #{tpu_custom_call.1} parent=55 // pred_check_branch
          %1480 = sbr.rel (%p1478) target = $region72
        $region71: #{tpu_custom_call.1} parent=55 // pred_region
          %s1481 = smul.u32 2, %s30
          %1483 = vsyncadd %s1474, 0
          %s1484 = smul.addr %s29, 2
          %s1485 = sadd.s32 %s1481, %s1484
          %s1486 = smul.addr %s1485, 8
          %s1487 = scalar_lea.hbm %s9, %s1486
          %s1488 = sshll.u32 %s1477, 4
          %s1489 = int_to_ptr.vmem [resolvable:$true] %s1488
          %s1490 = sshll.u32 %s1487, 4
          %s1491 = int_to_ptr.hbm [resolvable:$true] %s1490
          %1496 = dma.vmem_to_hbm [thread:$0]  %s1489, 256, %s1491, %s1474, 128, 128, 8
        $region72: #{tpu_custom_call.1} parent=55 // pred_fallthru
          _
      $region56: #{tpu_custom_call.1} parent=5 // pred_fallthru
        _
      %p1497 = scmp.le.s32.totalorder 2, %s20
      // Predicated region
      $region73: #{tpu_custom_call.1} parent=5 // pred_check
        %p1498 = pneg %p1497
      $region74: #{tpu_custom_call.1} parent=5 // pred_check_branch
        %1500 = sbr.rel (%p1498) target = $region76
      $region75: #{tpu_custom_call.1} parent=5 // pred_region
        %s1501 = ssub.s32 %s20, 2
        // Predicated region
        $region77: #{tpu_custom_call.1} parent=75 // pred_check
          %p1502 = pneg %p257
        $region78: #{tpu_custom_call.1} parent=75 // pred_check_branch
          %1504 = sbr.rel (%p1502) target = $region80
        $region79: #{tpu_custom_call.1} parent=75 // pred_region
          %s1505 = sand.u32 %s242, 1
          %s1506 = scalar_lea.sflag [#allocation4], %s1505
          %s1507 = sand.u32 %s242, 1
          %s1508 = smul.addr %s1507, 16
          %s1509 = scalar_lea.vmem [#allocation8], %s1508
          %1511 = dma.done %s1506, 256
        $region80: #{tpu_custom_call.1} parent=75 // pred_fallthru
          _
      $region76: #{tpu_custom_call.1} parent=5 // pred_fallthru
        _
    $region6: #{tpu_custom_call.1} parent=1 // loop_footer
      %s24 = sadd.s32 1, %s20
    $region7: #{tpu_custom_call.1} parent=1 // loop_footer_branch
      %19 = sbr.rel target = $region3
    $region8: #{tpu_custom_call.1} parent=1 // loop_exit
      _
    %1512 = vsyncpa [#allocation3], 1
    %s1513 = scalar_lea.sflag [#allocation3], 1
    %1514 = vsyncpa %s1513, 1
    %1515 = vsyncpa [#allocation6], 1
    %1516 = vsyncpa [#allocation4], 1
    %s1517 = scalar_lea.sflag [#allocation4], 1
    %1518 = vsyncpa %s1517, 1

</llo_original>
